<compile_context>
chip_gen: v7x
topology: tpu7x:2x2x1
jax: 0.10.0
libtpu: 0.0.40
codegen_flags: <defaults>
</compile_context>

<pallas_src>
import functools

import numpy as np
import jax
import jax.numpy as jnp
from jax import lax
from jax.experimental import pallas as pl
from jax.experimental.pallas import tpu as pltpu

K = 5        # conv kernel size
POOL = 2     # maxpool window / stride
SUB = 16     # sublane alignment of the slab row blocks (bf16 packed tile)


def _round_up(x, m):
    return (x + m - 1) // m * m


def _choose_bt(B):
    """Images per grid step: large lane blocks, but always >= 2 grid steps
    when B >= 2 so both v7x TensorCores get work (no effect on v5e/v6e)."""
    return min(32, max(1, (B + 1) // 2))


# ---------------------------------------------------------------------------
# Fused Conv2d(k=5, s=1, p=2) + bias + ReLU + MaxPool2d(2) kernel.
# One grid step = one batch block of `bt` images = TWO MXU dots.
#
#   x_ref : (1, (K+1)*L, N)  bf16 slab, N = bt*n_pos
#             slab[s*L + t*Cin + c, b*n_pos + i*W2 + j] = xpad[b, c, 2i+s, 2j+t]
#   w_ref : (2*Cout, K*L)    bf16, row dw*Cout+o, col kh*L + t*Cin + c
#             = w[o, c, kh, t-dw]   (zero outside 0 <= t-dw < K)
#   b_ref : (Cout, 1)        f32 bias
#   o_ref : (1, Cout, N)     f32 pooled output, [0, o, b*n_pos + pos]
# ---------------------------------------------------------------------------
def _conv_relu_pool_kernel(x_ref, w_ref, b_ref, o_ref, *, L):
    Cout = o_ref.shape[1]
    KL = w_ref.shape[1]
    w = w_ref[...]
    m = None
    for dh in range(POOL):                                   # 2 dots per step
        acc = jnp.dot(w, x_ref[0, pl.ds(dh * L, KL), :],
                      preferred_element_type=jnp.float32)
        m = acc if m is None else jnp.maximum(m, acc)        # max over dh
    m = jnp.maximum(m[:Cout, :], m[Cout:, :])                # max over dw halves
    # bias + ReLU once, after the max (exact by monotonicity); single broadcast
    o_ref[0] = jnp.maximum(m + b_ref[...], 0.0).astype(o_ref.dtype)


def _make_pool_weights(w_oihw):
    """PyTorch OIHW conv weight -> stacked (2*Cout, K*L) bf16 matrix with the
    maxpool column shift dw folded into the row (M) axis and kh folded into
    the contraction axis."""
    Cout, Cin, _, _ = w_oihw.shape
    Lc = (K + 1) * Cin
    L = _round_up(Lc, SUB)
    base = jnp.transpose(w_oihw, (0, 2, 3, 1))               # [o, kh, kw, c]
    stk = jnp.zeros((POOL, Cout, K, K + 1, Cin), w_oihw.dtype)
    for dw in range(POOL):
        stk = stk.at[dw, :, :, dw:dw + K, :].set(base)       # t = kw + dw
    stk = stk.reshape(POOL, Cout, K, Lc)
    if L != Lc:
        stk = jnp.pad(stk, ((0, 0), (0, 0), (0, 0), (0, L - Lc)))
    return stk.reshape(POOL * Cout, K * L).astype(jnp.bfloat16)


def conv_relu_pool(x_nchw, w_stk, bias, *, bt):
    """Fused Conv2d(k=5,s=1,p=2) + ReLU + MaxPool2d(2) on NCHW input.

    x_nchw: (B, Cin, H, W) with B % bt == 0.
    Returns (B//bt, Cout, bt*n_pos) with
      out[blk, o, b*n_pos + i*W2 + j] = y[blk*bt + b, o, i, j]."""
    B, Cin, H, W = x_nchw.shape
    Cout = w_stk.shape[0] // POOL
    L = w_stk.shape[1] // K
    Lc = (K + 1) * Cin
    H2, W2 = H // POOL, W // POOL
    n_pos = H2 * W2
    nblk = B // bt
    pad = K // 2

    xb = x_nchw.astype(jnp.bfloat16)
    xp = jnp.pad(xb, ((0, 0), (0, 0), (pad, pad), (pad, pad)))
    # cols[b, t, c, h, j] = xp[b, c, h, 2j + t]
    cols = jnp.stack([xp[:, :, :, t:t + POOL * W2:POOL] for t in range(K + 1)],
                     axis=1)
    # rows[b, s, t, c, i, j] = xp[b, c, 2i + s, 2j + t]
    rows = jnp.stack([cols[:, :, :, s:s + POOL * H2:POOL, :] for s in range(K + 1)],
                     axis=1)
    # -> slab[blk, s*L + t*Cin + c, b*n_pos + pos]
    rows = rows.reshape(nblk, bt, K + 1, K + 1, Cin, H2, W2)
    slab = jnp.transpose(rows, (0, 2, 3, 4, 1, 5, 6)).reshape(
        nblk, K + 1, Lc, bt * n_pos)
    if L != Lc:
        slab = jnp.pad(slab, ((0, 0), (0, 0), (0, L - Lc), (0, 0)))
    slab = slab.reshape(nblk, (K + 1) * L, bt * n_pos)
    # TODO(synk): build this slab in-kernel from the padded NCHW block via
    # strided DMA to avoid the ~9x HBM blowup XLA materializes here.

    out = pl.pallas_call(
        functools.partial(_conv_relu_pool_kernel, L=L),
        out_shape=jax.ShapeDtypeStruct((nblk, Cout, bt * n_pos), jnp.float32),
        grid=(nblk,),
        in_specs=[
            pl.BlockSpec((1, (K + 1) * L, bt * n_pos), lambda i: (i, 0, 0)),
            pl.BlockSpec((POOL * Cout, K * L), lambda i: (0, 0)),
            pl.BlockSpec((Cout, 1), lambda i: (0, 0)),
        ],
        out_specs=pl.BlockSpec((1, Cout, bt * n_pos), lambda i: (i, 0, 0)),
        compiler_params=pltpu.CompilerParams(
            dimension_semantics=("parallel",),
            vmem_limit_bytes=32 * 1024 * 1024),
    )(slab, w_stk, bias.astype(jnp.float32).reshape(Cout, 1))
    return out


# ---------------------------------------------------------------------------
# Linear layer: out = x @ W + b, B-tiled grid, Dout padded to 128 lanes.
# ---------------------------------------------------------------------------
def _linear_kernel(x_ref, w_ref, b_ref, o_ref):
    o_ref[...] = (jnp.dot(x_ref[...], w_ref[...],
                          preferred_element_type=jnp.float32)
                  + b_ref[...]).astype(o_ref.dtype)


def linear(x, w, b):
    """x: (B, Din), w: (Din, Dout), b: (Dout,) -> (B, Dout)."""
    B, Din = x.shape
    Dout = w.shape[1]
    Dp = _round_up(Dout, 128)                      # lane-dense output
    if Dp != Dout:
        w = jnp.pad(w, ((0, 0), (0, Dp - Dout)))
        b = jnp.pad(b, ((0, Dp - Dout),))
    tm = min(128, _round_up(B, 8))                 # row tile; VMEM-safe for big B
    Bp = _round_up(B, tm)
    if Bp != B:
        x = jnp.pad(x, ((0, Bp - B), (0, 0)))
    out = pl.pallas_call(
        _linear_kernel,
        out_shape=jax.ShapeDtypeStruct((Bp, Dp), jnp.float32),
        grid=(Bp // tm,),
        in_specs=[pl.BlockSpec((tm, Din), lambda i: (i, 0)),
                  pl.BlockSpec((Din, Dp), lambda i: (0, 0)),
                  pl.BlockSpec((1, Dp), lambda i: (0, 0))],
        out_specs=pl.BlockSpec((tm, Dp), lambda i: (i, 0)),
        compiler_params=pltpu.CompilerParams(
            dimension_semantics=("parallel",),
            vmem_limit_bytes=32 * 1024 * 1024),
    )(x, w, b.reshape(1, Dp))
    return out[:B, :Dout]


# ---------------------------------------------------------------------------
# Full forward pass (mirrors CNN.forward). Params in PyTorch layouts:
# conv weights OIHW, linear weight (out, in).
# ---------------------------------------------------------------------------
def cnn_forward(x_nchw, params):
    w1, b1, w2, b2, w3, b3 = params
    B0 = x_nchw.shape[0]
    bt = _choose_bt(B0)
    Bp = _round_up(B0, bt)
    if Bp != B0:
        x_nchw = jnp.pad(x_nchw, ((0, Bp - B0), (0, 0), (0, 0), (0, 0)))
    nblk = Bp // bt

    wp1 = _make_pool_weights(w1)                    # (32, K*L1) bf16
    wp2 = _make_pool_weights(w2)                    # (64, K*L2) bf16

    y1 = conv_relu_pool(x_nchw, wp1, b1, bt=bt)     # (nblk, 16, bt*196)
    y1 = (y1.reshape(nblk, 16, bt, 14, 14)
            .transpose(0, 2, 1, 3, 4).reshape(Bp, 16, 14, 14))   # back to NCHW
    y2 = conv_relu_pool(y1, wp2, b2, bt=bt)         # (nblk, 32, bt*49)
    y2 = (y2.reshape(nblk, 32, bt, 49)
            .transpose(0, 2, 1, 3).reshape(Bp, 32 * 7 * 7))      # torch .view(B,-1)
    logits = linear(y2, w3.T, b3)                   # (Bp, 10)
    return logits[:B0]


# ---------------------------------------------------------------------------
# Pure-JAX reference mirroring the PyTorch module exactly (NCHW / OIHW, f32).
# ---------------------------------------------------------------------------
def torch_reference(x_nchw, params):
    w1, b1, w2, b2, w3, b3 = params

    def conv_relu(x, w, b):
        y = lax.conv_general_dilated(
            x, w, window_strides=(1, 1), padding=((2, 2), (2, 2)),
            dimension_numbers=("NCHW", "OIHW", "NCHW"))
        return jnp.maximum(y + b[None, :, None, None], 0.0)

    def pool(x):
        return lax.reduce_window(x, -jnp.inf, lax.max,
                                 (1, 1, 2, 2), (1, 1, 2, 2), "VALID")

    x = pool(conv_relu(x_nchw, w1, b1))
    x = pool(conv_relu(x, w2, b2))
    x = x.reshape(x.shape[0], -1)
    return x @ w3.T + b3


if __name__ == "__main__":
    key = jax.random.PRNGKey(0)
    ks = jax.random.split(key, 7)
    B = 2
    # Input implied by Linear(32*7*7): 28x28 single-channel images.
    x = jax.random.normal(ks[0], (B, 1, 28, 28), jnp.float32)

    def uinit(k, shape, fan_in):
        bound = 1.0 / float(np.sqrt(fan_in))
        return jax.random.uniform(k, shape, jnp.float32, -bound, bound)

    # Deterministic synthetic params in PyTorch layout (OIHW / (out, in)).
    w1 = uinit(ks[1], (16, 1, 5, 5), 1 * 5 * 5)
    b1 = uinit(ks[2], (16,), 1 * 5 * 5)
    w2 = uinit(ks[3], (32, 16, 5, 5), 16 * 5 * 5)
    b2 = uinit(ks[4], (32,), 16 * 5 * 5)
    w3 = uinit(ks[5], (10, 32 * 7 * 7), 32 * 7 * 7)
    b3 = uinit(ks[6], (10,), 32 * 7 * 7)
    params = (w1, b1, w2, b2, w3, b3)

    fwd = jax.jit(cnn_forward)
    out = jax.block_until_ready(fwd(x, params))
    assert out.shape == (B, 10)

    ref = torch_reference(x, params)
    # Conv dots run with bf16 MXU inputs (f32 accumulation), so compare against
    # the f32 reference with a bf16-appropriate tolerance.
    np.testing.assert_allclose(np.asarray(out), np.asarray(ref),
                               rtol=2e-2, atol=2e-2)
    print("KERNEL_OK")
</pallas_src>

<mosaic_0001>
module attributes {stable_mosaic.version = 11 : i64} {
  func.func @_conv_relu_pool_kernel(%arg0: i32, %arg1: memref<1x96x196xbf16, #tpu.memory_space<vmem>>, %arg2: memref<32x80xbf16, #tpu.memory_space<vmem>>, %arg3: memref<16x1xf32, #tpu.memory_space<vmem>>, %arg4: memref<1x16x196xf32, #tpu.memory_space<vmem>>) attributes {dimension_semantics = [#tpu.dimension_semantics<parallel>], iteration_bounds = array<i64: 2>, scalar_prefetch = 0 : i64, scratch_operands = 0 : i64, tpu.core_type = #tpu.core_type<tc>, window_params = [{transform_indices = @transform_0, window_bounds = array<i64: 1, 96, 196>}, {pipeline_mode = #tpu.pipeline_mode<synchronous>, transform_indices = @transform_1, window_bounds = array<i64: 32, 80>}, {pipeline_mode = #tpu.pipeline_mode<synchronous>, transform_indices = @transform_2, window_bounds = array<i64: 16, 1>}, {transform_indices = @transform_3, window_bounds = array<i64: 1, 16, 196>}]} {
    %c0 = arith.constant 0 : index
    %c0_0 = arith.constant 0 : index
    %0 = vector.load %arg2[%c0, %c0_0] : memref<32x80xbf16, #tpu.memory_space<vmem>>, vector<32x80xbf16>
    %c0_1 = arith.constant 0 : index
    %c0_2 = arith.constant 0 : index
    %c0_3 = arith.constant 0 : index
    %1 = vector.load %arg1[%c0_1, %c0_2, %c0_3] : memref<1x96x196xbf16, #tpu.memory_space<vmem>>, vector<1x80x196xbf16>
    %2 = vector.shape_cast %1 : vector<1x80x196xbf16> to vector<80x196xbf16>
    %cst = arith.constant dense<0.000000e+00> : vector<32x196xf32>
    %3 = tpu.matmul %0, %2, %cst {dimension_numbers = #tpu.dot_dimension_numbers<[1], [0], [0], [1], [0, 0, 1, 1], [], []>} : vector<32x80xbf16>, vector<80x196xbf16>, vector<32x196xf32> -> vector<32x196xf32>
    %c0_4 = arith.constant 0 : index
    %c16 = arith.constant 16 : index
    %c0_5 = arith.constant 0 : index
    %4 = vector.load %arg1[%c0_4, %c16, %c0_5] : memref<1x96x196xbf16, #tpu.memory_space<vmem>>, vector<1x80x196xbf16>
    %5 = vector.shape_cast %4 : vector<1x80x196xbf16> to vector<80x196xbf16>
    %cst_6 = arith.constant dense<0.000000e+00> : vector<32x196xf32>
    %6 = tpu.matmul %0, %5, %cst_6 {dimension_numbers = #tpu.dot_dimension_numbers<[1], [0], [0], [1], [0, 0, 1, 1], [], []>} : vector<32x80xbf16>, vector<80x196xbf16>, vector<32x196xf32> -> vector<32x196xf32>
    %7 = arith.maximumf %3, %6 : vector<32x196xf32>
    %8 = vector.extract_strided_slice %7 {offsets = [0, 0], sizes = [16, 196], strides = [1, 1]} : vector<32x196xf32> to vector<16x196xf32>
    %9 = vector.extract_strided_slice %7 {offsets = [16, 0], sizes = [16, 196], strides = [1, 1]} : vector<32x196xf32> to vector<16x196xf32>
    %10 = arith.maximumf %8, %9 : vector<16x196xf32>
    %c0_7 = arith.constant 0 : index
    %c0_8 = arith.constant 0 : index
    %11 = vector.load %arg3[%c0_7, %c0_8] : memref<16x1xf32, #tpu.memory_space<vmem>>, vector<16x1xf32>
    %12 = vector.broadcast %11 : vector<16x1xf32> to vector<16x196xf32>
    %13 = arith.addf %10, %12 : vector<16x196xf32>
    %cst_9 = arith.constant 0.000000e+00 : f32
    %14 = vector.broadcast %cst_9 : f32 to vector<16x196xf32>
    %15 = arith.maximumf %13, %14 : vector<16x196xf32>
    %c0_10 = arith.constant 0 : index
    %c0_11 = arith.constant 0 : index
    %c0_12 = arith.constant 0 : index
    %16 = vector.load %arg4[%c0_10, %c0_11, %c0_12] : memref<1x16x196xf32, #tpu.memory_space<vmem>>, vector<1x16x196xf32>
    %17 = vector.shape_cast %16 : vector<1x16x196xf32> to vector<16x196xf32>
    %18 = vector.shape_cast %15 : vector<16x196xf32> to vector<1x16x196xf32>
    tpu.vector_store %arg4[%c0_10, %c0_11, %c0_12], %18 {strides = array<i32>} : memref<1x16x196xf32, #tpu.memory_space<vmem>>, vector<1x16x196xf32>,
    return
  }
  func.func @transform_0(%arg0: i32) -> (i32, i32, i32) {
    %c0_i32 = arith.constant 0 : i32
    %c0_i32_0 = arith.constant 0 : i32
    %c0_i32_1 = arith.constant 0 : i32
    return %arg0, %c0_i32, %c0_i32_0 : i32, i32, i32
  }
  func.func @transform_1(%arg0: i32) -> (i32, i32) {
    %c0_i32 = arith.constant 0 : i32
    %c0_i32_0 = arith.constant 0 : i32
    %c0_i32_1 = arith.constant 0 : i32
    return %c0_i32, %c0_i32_0 : i32, i32
  }
  func.func @transform_2(%arg0: i32) -> (i32, i32) {
    %c0_i32 = arith.constant 0 : i32
    %c0_i32_0 = arith.constant 0 : i32
    %c0_i32_1 = arith.constant 0 : i32
    return %c0_i32, %c0_i32_0 : i32, i32
  }
  func.func @transform_3(%arg0: i32) -> (i32, i32, i32) {
    %c0_i32 = arith.constant 0 : i32
    %c0_i32_0 = arith.constant 0 : i32
    %c0_i32_1 = arith.constant 0 : i32
    return %arg0, %c0_i32, %c0_i32_0 : i32, i32, i32
  }
}

module attributes {stable_mosaic.version = 11 : i64} {
  func.func @_conv_relu_pool_kernel(%arg0: i32, %arg1: memref<1x576x49xbf16, #tpu.memory_space<vmem>>, %arg2: memref<64x480xbf16, #tpu.memory_space<vmem>>, %arg3: memref<32x1xf32, #tpu.memory_space<vmem>>, %arg4: memref<1x32x49xf32, #tpu.memory_space<vmem>>) attributes {dimension_semantics = [#tpu.dimension_semantics<parallel>], iteration_bounds = array<i64: 2>, scalar_prefetch = 0 : i64, scratch_operands = 0 : i64, tpu.core_type = #tpu.core_type<tc>, window_params = [{transform_indices = @transform_0, window_bounds = array<i64: 1, 576, 49>}, {pipeline_mode = #tpu.pipeline_mode<synchronous>, transform_indices = @transform_1, window_bounds = array<i64: 64, 480>}, {pipeline_mode = #tpu.pipeline_mode<synchronous>, transform_indices = @transform_2, window_bounds = array<i64: 32, 1>}, {transform_indices = @transform_3, window_bounds = array<i64: 1, 32, 49>}]} {
    %c0 = arith.constant 0 : index
    %c0_0 = arith.constant 0 : index
    %0 = vector.load %arg2[%c0, %c0_0] : memref<64x480xbf16, #tpu.memory_space<vmem>>, vector<64x480xbf16>
    %c0_1 = arith.constant 0 : index
    %c0_2 = arith.constant 0 : index
    %c0_3 = arith.constant 0 : index
    %1 = vector.load %arg1[%c0_1, %c0_2, %c0_3] : memref<1x576x49xbf16, #tpu.memory_space<vmem>>, vector<1x480x49xbf16>
    %2 = vector.shape_cast %1 : vector<1x480x49xbf16> to vector<480x49xbf16>
    %cst = arith.constant dense<0.000000e+00> : vector<64x49xf32>
    %3 = tpu.matmul %0, %2, %cst {dimension_numbers = #tpu.dot_dimension_numbers<[1], [0], [0], [1], [0, 0, 1, 1], [], []>} : vector<64x480xbf16>, vector<480x49xbf16>, vector<64x49xf32> -> vector<64x49xf32>
    %c0_4 = arith.constant 0 : index
    %c96 = arith.constant 96 : index
    %c0_5 = arith.constant 0 : index
    %4 = vector.load %arg1[%c0_4, %c96, %c0_5] : memref<1x576x49xbf16, #tpu.memory_space<vmem>>, vector<1x480x49xbf16>
    %5 = vector.shape_cast %4 : vector<1x480x49xbf16> to vector<480x49xbf16>
    %cst_6 = arith.constant dense<0.000000e+00> : vector<64x49xf32>
    %6 = tpu.matmul %0, %5, %cst_6 {dimension_numbers = #tpu.dot_dimension_numbers<[1], [0], [0], [1], [0, 0, 1, 1], [], []>} : vector<64x480xbf16>, vector<480x49xbf16>, vector<64x49xf32> -> vector<64x49xf32>
    %7 = arith.maximumf %3, %6 : vector<64x49xf32>
    %8 = vector.extract_strided_slice %7 {offsets = [0, 0], sizes = [32, 49], strides = [1, 1]} : vector<64x49xf32> to vector<32x49xf32>
    %9 = vector.extract_strided_slice %7 {offsets = [32, 0], sizes = [32, 49], strides = [1, 1]} : vector<64x49xf32> to vector<32x49xf32>
    %10 = arith.maximumf %8, %9 : vector<32x49xf32>
    %c0_7 = arith.constant 0 : index
    %c0_8 = arith.constant 0 : index
    %11 = vector.load %arg3[%c0_7, %c0_8] : memref<32x1xf32, #tpu.memory_space<vmem>>, vector<32x1xf32>
    %12 = vector.broadcast %11 : vector<32x1xf32> to vector<32x49xf32>
    %13 = arith.addf %10, %12 : vector<32x49xf32>
    %cst_9 = arith.constant 0.000000e+00 : f32
    %14 = vector.broadcast %cst_9 : f32 to vector<32x49xf32>
    %15 = arith.maximumf %13, %14 : vector<32x49xf32>
    %c0_10 = arith.constant 0 : index
    %c0_11 = arith.constant 0 : index
    %c0_12 = arith.constant 0 : index
    %16 = vector.load %arg4[%c0_10, %c0_11, %c0_12] : memref<1x32x49xf32, #tpu.memory_space<vmem>>, vector<1x32x49xf32>
    %17 = vector.shape_cast %16 : vector<1x32x49xf32> to vector<32x49xf32>
    %18 = vector.shape_cast %15 : vector<32x49xf32> to vector<1x32x49xf32>
    tpu.vector_store %arg4[%c0_10, %c0_11, %c0_12], %18 {strides = array<i32>} : memref<1x32x49xf32, #tpu.memory_space<vmem>>, vector<1x32x49xf32>,
    return
  }
  func.func @transform_0(%arg0: i32) -> (i32, i32, i32) {
    %c0_i32 = arith.constant 0 : i32
    %c0_i32_0 = arith.constant 0 : i32
    %c0_i32_1 = arith.constant 0 : i32
    return %arg0, %c0_i32, %c0_i32_0 : i32, i32, i32
  }
  func.func @transform_1(%arg0: i32) -> (i32, i32) {
    %c0_i32 = arith.constant 0 : i32
    %c0_i32_0 = arith.constant 0 : i32
    %c0_i32_1 = arith.constant 0 : i32
    return %c0_i32, %c0_i32_0 : i32, i32
  }
  func.func @transform_2(%arg0: i32) -> (i32, i32) {
    %c0_i32 = arith.constant 0 : i32
    %c0_i32_0 = arith.constant 0 : i32
    %c0_i32_1 = arith.constant 0 : i32
    return %c0_i32, %c0_i32_0 : i32, i32
  }
  func.func @transform_3(%arg0: i32) -> (i32, i32, i32) {
    %c0_i32 = arith.constant 0 : i32
    %c0_i32_0 = arith.constant 0 : i32
    %c0_i32_1 = arith.constant 0 : i32
    return %arg0, %c0_i32, %c0_i32_0 : i32, i32, i32
  }
}

module attributes {stable_mosaic.version = 11 : i64} {
  func.func @_linear_kernel(%arg0: i32, %arg1: memref<8x1568xf32, #tpu.memory_space<vmem>>, %arg2: memref<1568x128xf32, #tpu.memory_space<vmem>>, %arg3: memref<1x128xf32, #tpu.memory_space<vmem>>, %arg4: memref<8x128xf32, #tpu.memory_space<vmem>>) attributes {dimension_semantics = [#tpu.dimension_semantics<parallel>], iteration_bounds = array<i64: 1>, scalar_prefetch = 0 : i64, scratch_operands = 0 : i64, tpu.core_type = #tpu.core_type<tc>, window_params = [{transform_indices = @transform_0, window_bounds = array<i64: 8, 1568>}, {pipeline_mode = #tpu.pipeline_mode<synchronous>, transform_indices = @transform_1, window_bounds = array<i64: 1568, 128>}, {pipeline_mode = #tpu.pipeline_mode<synchronous>, transform_indices = @transform_2, window_bounds = array<i64: 1, 128>}, {transform_indices = @transform_3, window_bounds = array<i64: 8, 128>}]} {
    %c0 = arith.constant 0 : index
    %c0_0 = arith.constant 0 : index
    %0 = vector.load %arg1[%c0, %c0_0] : memref<8x1568xf32, #tpu.memory_space<vmem>>, vector<8x1568xf32>
    %c0_1 = arith.constant 0 : index
    %c0_2 = arith.constant 0 : index
    %1 = vector.load %arg2[%c0_1, %c0_2] : memref<1568x128xf32, #tpu.memory_space<vmem>>, vector<1568x128xf32>
    %cst = arith.constant dense<0.000000e+00> : vector<8x128xf32>
    %2 = tpu.matmul %0, %1, %cst {dimension_numbers = #tpu.dot_dimension_numbers<[1], [0], [0], [1], [0, 0, 1, 1], [], []>} : vector<8x1568xf32>, vector<1568x128xf32>, vector<8x128xf32> -> vector<8x128xf32>
    %c0_3 = arith.constant 0 : index
    %c0_4 = arith.constant 0 : index
    %3 = vector.load %arg3[%c0_3, %c0_4] : memref<1x128xf32, #tpu.memory_space<vmem>>, vector<1x128xf32>
    %4 = vector.broadcast %3 : vector<1x128xf32> to vector<8x128xf32>
    %5 = arith.addf %2, %4 : vector<8x128xf32>
    %c0_5 = arith.constant 0 : index
    %c0_6 = arith.constant 0 : index
    %6 = vector.load %arg4[%c0_5, %c0_6] : memref<8x128xf32, #tpu.memory_space<vmem>>, vector<8x128xf32>
    tpu.vector_store %arg4[%c0_5, %c0_6], %5 {strides = array<i32>} : memref<8x128xf32, #tpu.memory_space<vmem>>, vector<8x128xf32>,
    return
  }
  func.func @transform_0(%arg0: i32) -> (i32, i32) {
    %c0_i32 = arith.constant 0 : i32
    %c0_i32_0 = arith.constant 0 : i32
    return %arg0, %c0_i32 : i32, i32
  }
  func.func @transform_1(%arg0: i32) -> (i32, i32) {
    %c0_i32 = arith.constant 0 : i32
    %c0_i32_0 = arith.constant 0 : i32
    %c0_i32_1 = arith.constant 0 : i32
    return %c0_i32, %c0_i32_0 : i32, i32
  }
  func.func @transform_2(%arg0: i32) -> (i32, i32) {
    %c0_i32 = arith.constant 0 : i32
    %c0_i32_0 = arith.constant 0 : i32
    %c0_i32_1 = arith.constant 0 : i32
    return %c0_i32, %c0_i32_0 : i32, i32
  }
  func.func @transform_3(%arg0: i32) -> (i32, i32) {
    %c0_i32 = arith.constant 0 : i32
    %c0_i32_0 = arith.constant 0 : i32
    return %arg0, %c0_i32 : i32, i32
  }
}

</mosaic_0001>

<llo_original>
// kernel: cnn_forward.3
$region0: #{cnn_forward.3}
  #allocation0 [shape = 'u32[]', space=smem, size = 0x4, offset = 0x4, fixed_abs, tag = 'smem constant byte address 0x4 - core index']
  #allocation1 [shape = 'u32[144,128]{1,0:T(1,128)}', space=vmem, size = 0x12000, scoped, tag = 'internal scratch']
  %s0 = inlined_call_operand.vmem [shape: bf16[2,96,196], index: 0, kind: input, shape index: {}]
  %s1 = inlined_call_operand.vmem [shape: bf16[32,80], index: 1, kind: input, shape index: {}]
  %s2 = inlined_call_operand.vmem [shape: f32[16,1], index: 2, kind: input, shape index: {}]
  %s3 = inlined_call_operand.vmem [shape: f32[2,16,196], index: 3, kind: output, shape index: {}]
  %s4 = sld [smem:[#allocation0]]
  $region45: #{cnn_forward.3} parent=0
    _
  %s6 = ssub.s32 1, %s4
  %s7 = scalar_select 0, %s6, %s4
  loop: start=0, step=1, limit=4
  $region2: #{cnn_forward.3} parent=0 // loop_pre_header
    _
  $region3: #{cnn_forward.3} parent=0 // loop_header
    %s9 = sphi 0, %s13
    %p10 = scmp.ge.s32.totalorder %s9, 4
    %s19 = sphi 0, %s21
    %s22 = sphi 0, %s19
    %s23 = sphi 0, %s22
    %s39 = sphi 0, %s23
    %s43 = sphi 0, %s43
    %s45 = sphi 0, %s43
    %s46 = sphi 0, %s45
    %s60 = sphi 0, %s46
    %s64 = sphi 0, %s64
    %s66 = sphi 0, %s64
    %s67 = sphi 0, %s66
    %s81 = sphi 0, %s67
    %s87 = sphi 0, %s89
    %s90 = sphi 0, %s87
    %s91 = sphi 0, %s90
    %s107 = sphi 0, %s91
  $region4: #{cnn_forward.3} parent=0 // loop_header_branch
    %12 = sbr.rel (%p10) target = $region8
  $region5: #{cnn_forward.3} parent=0 // loop_body
    %s14 = ssub.s32 %s9, 1
    %s15 = ssub.s32 %s9, 2
    %s16 = sadd.s32 %s9, 1
    %s17 = ssub.s32 %s9, %s16
    %p18 = scmp.eq.s32.totalorder %s17, 0
    %s20 = sadd.s32 %s19, 1
    %s21 = scalar_select %p18, %s19, %s20
    %p24 = pneg %p18
    %p25 = scmp.eq.s32.totalorder %s9, 1
    %p26 = por %p24, %p25
    %p27 = scmp.ne.s32.totalorder %s19, %s22
    %p28 = scmp.eq.s32.totalorder %s9, 0
    %p29 = por %p27, %p28
    %p30 = scmp.ne.s32.totalorder %s19, %s22
    %p31 = scmp.eq.s32.totalorder %s14, 1
    %p32 = por %p30, %p31
    %p33 = scmp.ne.s32.totalorder %s22, %s23
    %p34 = scmp.eq.s32.totalorder %s14, 0
    %p35 = por %p33, %p34
    %p36 = scmp.ne.s32.totalorder %s22, %s23
    %p37 = scmp.eq.s32.totalorder %s15, 1
    %p38 = por %p36, %p37
    %p40 = scmp.ne.s32.totalorder %s23, %s39
    %p41 = scmp.eq.s32.totalorder %s15, 0
    %p42 = por %p40, %p41
    %s44 = sadd.s32 %s43, 1
    %p47 = scmp.eq.s32.totalorder %s9, 1
    %p48 = scmp.ne.s32.totalorder %s43, %s45
    %p49 = scmp.eq.s32.totalorder %s9, 0
    %p50 = por %p48, %p49
    %p51 = scmp.ne.s32.totalorder %s43, %s45
    %p52 = scmp.eq.s32.totalorder %s14, 1
    %p53 = por %p51, %p52
    %p54 = scmp.ne.s32.totalorder %s45, %s46
    %p55 = scmp.eq.s32.totalorder %s14, 0
    %p56 = por %p54, %p55
    %p57 = scmp.ne.s32.totalorder %s45, %s46
    %p58 = scmp.eq.s32.totalorder %s15, 1
    %p59 = por %p57, %p58
    %p61 = scmp.ne.s32.totalorder %s46, %s60
    %p62 = scmp.eq.s32.totalorder %s15, 0
    %p63 = por %p61, %p62
    %s65 = sadd.s32 %s64, 1
    %p68 = scmp.eq.s32.totalorder %s9, 1
    %p69 = scmp.ne.s32.totalorder %s64, %s66
    %p70 = scmp.eq.s32.totalorder %s9, 0
    %p71 = por %p69, %p70
    %p72 = scmp.ne.s32.totalorder %s64, %s66
    %p73 = scmp.eq.s32.totalorder %s14, 1
    %p74 = por %p72, %p73
    %p75 = scmp.ne.s32.totalorder %s66, %s67
    %p76 = scmp.eq.s32.totalorder %s14, 0
    %p77 = por %p75, %p76
    %p78 = scmp.ne.s32.totalorder %s66, %s67
    %p79 = scmp.eq.s32.totalorder %s15, 1
    %p80 = por %p78, %p79
    %p82 = scmp.ne.s32.totalorder %s67, %s81
    %p83 = scmp.eq.s32.totalorder %s15, 0
    %p84 = por %p82, %p83
    %s85 = ssub.s32 %s9, %s16
    %p86 = scmp.eq.s32.totalorder %s85, 0
    %s88 = sadd.s32 %s87, 1
    %s89 = scalar_select %p86, %s87, %s88
    %p92 = pneg %p86
    %p93 = scmp.eq.s32.totalorder %s9, 1
    %p94 = por %p92, %p93
    %p95 = scmp.ne.s32.totalorder %s87, %s90
    %p96 = scmp.eq.s32.totalorder %s9, 0
    %p97 = por %p95, %p96
    %p98 = scmp.ne.s32.totalorder %s87, %s90
    %p99 = scmp.eq.s32.totalorder %s14, 1
    %p100 = por %p98, %p99
    %p101 = scmp.ne.s32.totalorder %s90, %s91
    %p102 = scmp.eq.s32.totalorder %s14, 0
    %p103 = por %p101, %p102
    %p104 = scmp.ne.s32.totalorder %s90, %s91
    %p105 = scmp.eq.s32.totalorder %s15, 1
    %p106 = por %p104, %p105
    %p108 = scmp.ne.s32.totalorder %s91, %s107
    %p109 = scmp.eq.s32.totalorder %s15, 0
    %p110 = por %p108, %p109
    %p111 = scmp.le.s32.totalorder 1, %s9
    %p112 = scmp.lt.s32.totalorder %s9, 3
    %p113 = pnand %p111, %p112
    %p114 = pneg %p113
    // Predicated region
    $region9: #{cnn_forward.3} parent=5 // pred_check
      _
    $region10: #{cnn_forward.3} parent=5 // pred_check_branch
      %116 = sbr.rel (%p113) target = $region12
    $region11: #{cnn_forward.3} parent=5 // pred_region
      %s117 = ssub.s32 %s9, 1
      // Predicated region
      $region13: #{cnn_forward.3} parent=11 // pred_check
        %p118 = pneg %p56
      $region14: #{cnn_forward.3} parent=11 // pred_check_branch
        %120 = sbr.rel (%p118) target = $region16
      $region15: #{cnn_forward.3} parent=11 // pred_region
        _
      $region16: #{cnn_forward.3} parent=11 // pred_fallthru
        _
      // Predicated region
      $region17: #{cnn_forward.3} parent=11 // pred_check
        %p121 = pneg %p77
      $region18: #{cnn_forward.3} parent=11 // pred_check_branch
        %123 = sbr.rel (%p121) target = $region20
      $region19: #{cnn_forward.3} parent=11 // pred_region
        _
      $region20: #{cnn_forward.3} parent=11 // pred_fallthru
        _
    $region12: #{cnn_forward.3} parent=5 // pred_fallthru
      _
    %p124 = scmp.lt.s32.totalorder %s9, 2
    // Predicated region
    $region21: #{cnn_forward.3} parent=5 // pred_check
      %p125 = pneg %p124
    $region22: #{cnn_forward.3} parent=5 // pred_check_branch
      %127 = sbr.rel (%p125) target = $region24
    $region23: #{cnn_forward.3} parent=5 // pred_region
      // Predicated region
      $region25: #{cnn_forward.3} parent=23 // pred_check
        %p128 = pneg %p29
      $region26: #{cnn_forward.3} parent=23 // pred_check_branch
        %130 = sbr.rel (%p128) target = $region28
      $region27: #{cnn_forward.3} parent=23 // pred_region
        %p131 = scmp.lt.s32.totalorder %s9, 1
        %s132 = scalar_select %p131, %s9, 1
        %s133 = smul.addr %s132, 24
        %s134 = smul.addr %s133, 4
        %s135 = scalar_lea.vmem %s0, %s134
      $region28: #{cnn_forward.3} parent=23 // pred_fallthru
        _
    $region24: #{cnn_forward.3} parent=5 // pred_fallthru
      _
    %p136 = scmp.le.s32.totalorder 1, %s9
    %p137 = scmp.lt.s32.totalorder %s9, 3
    %p138 = pnand %p136, %p137
    %p139 = pneg %p138
    // Predicated region
    $region29: #{cnn_forward.3} parent=5 // pred_check
      _
    $region30: #{cnn_forward.3} parent=5 // pred_check_branch
      %141 = sbr.rel (%p138) target = $region32
    $region31: #{cnn_forward.3} parent=5 // pred_region
      %s142 = ssub.s32 %s9, 1
      %p143 = scmp.lt.s32.totalorder %s14, 1
      %s144 = scalar_select %p143, %s14, 1
      %s145 = smul.addr %s144, 24
      %s146 = smul.addr %s145, 4
      %s147 = scalar_lea.vmem %s0, %s146
      %p148 = pneg %p35
      %p149 = pneg %p32
      %p150 = pneg %p56
      %p151 = pneg %p53
      %p152 = pneg %p77
      %p153 = pneg %p74
      %p154 = pneg %p103
      %p155 = pneg %p100
      %p156 = scmp.lt.s32.totalorder %s14, 1
      %s157 = scalar_select %p156, %s14, 1
      %s158 = smul.addr %s157, 4
      %s159 = smul.addr %s158, 8
      %s160 = scalar_lea.vmem %s3, %s159
      %p161 = scmp.lt.s32.totalorder %s14, 1
      %s162 = scalar_select %p161, %s14, 1
      %s163 = smul.addr %s162, 24
      %s164 = smul.addr %s163, 4
      %s165 = scalar_lea.vmem %s0, %s164
      %p166 = scmp.lt.s32.totalorder %s14, 1
      %s167 = scalar_select %p166, %s14, 1
      %s168 = smul.addr %s167, 4
      %s169 = smul.addr %s168, 8
      %s170 = scalar_lea.vmem %s3, %s169
      %v172 = vld [vmem:[%s1] sm:$0xf]
      %v173 = vld [vmem:[%s1 + $0x4] sm:$0xf]
      %v174 = vld [vmem:[%s1 + $0x8] sm:$0xf]
      %v175 = vld [vmem:[%s1 + $0xc] sm:$0xf]
      %v176 = vld [vmem:[%s165] sm:$0xff]
      %v177 = vld [vmem:[%s165 + $0x8] sm:$0xff]
      %v178 = vld [vmem:[%s165 + $0x10] sm:$0xff]
      %v179 = vld [vmem:[%s165 + $0x18] sm:$0xff]
      %v180 = vld [vmem:[%s165 + $0x20] sm:$0xff]
      %v181 = vld [vmem:[%s165 + $0x28] sm:$0xff]
      %v182 = vld [vmem:[%s165 + $0x30] sm:$0xff]
      %v183 = vld [vmem:[%s165 + $0x38] sm:$0xff]
      %v184 = vld [vmem:[%s165 + $0x40] sm:$0xff]
      %v185 = vld [vmem:[%s165 + $0x48] sm:$0xff]
      %v190 = vunpack.c.l.b16 %v172
      %v191 = vunpack.c.l.b16 %v173
      %v192 = vunpack.c.l.b16 %v174
      %v193 = vunpack.c.l.b16 %v175
      %v194 = vpack.c.b16 %v191, %v190
      %v195 = vpack.c.b16 %v193, %v192
      %v206 = vunpack.c.l.b16 %v176
      %v207 = vunpack.c.h.b16 %v176
      %v208 = vunpack.c.l.b16 %v177
      %v209 = vunpack.c.h.b16 %v177
      %v210 = vunpack.c.l.b16 %v178
      %v211 = vunpack.c.h.b16 %v178
      %v212 = vunpack.c.l.b16 %v179
      %v213 = vunpack.c.h.b16 %v179
      %v214 = vunpack.c.l.b16 %v180
      %v215 = vunpack.c.h.b16 %v180
      %v216 = vunpack.c.l.b16 %v181
      %v217 = vunpack.c.h.b16 %v181
      %v218 = vunpack.c.l.b16 %v182
      %v219 = vunpack.c.h.b16 %v182
      %v220 = vunpack.c.l.b16 %v183
      %v221 = vunpack.c.h.b16 %v183
      %v222 = vunpack.c.l.b16 %v184
      %v223 = vunpack.c.h.b16 %v184
      %v224 = vunpack.c.l.b16 %v185
      %v225 = vunpack.c.h.b16 %v185
      %v226 = vpack.c.b16 %v208, %v206
      %v227 = vpack.c.b16 %v209, %v207
      %v228 = vpack.c.b16 %v212, %v210
      %v229 = vpack.c.b16 %v213, %v211
      %v230 = vpack.c.b16 %v216, %v214
      %v231 = vpack.c.b16 %v217, %v215
      %v232 = vpack.c.b16 %v220, %v218
      %v233 = vpack.c.b16 %v221, %v219
      %v234 = vpack.c.b16 %v224, %v222
      %v235 = vpack.c.b16 %v225, %v223
      %vm246 = vcmask 654336
      %v248 = vsel %vm246, %v194, 0
      %v251 = vsel %vm246, %v195, 0
      %253 = vmatprep.subr.bf16.mxu0 %v227
      %254 = vmatpush1.bf16.msra.mxu0 %v226
      %255 = vmatprep.subr.bf16.mxu0 %v229
      %256 = vmatpush1.bf16.msra.mxu0 %v228
      %257 = vmatprep.subr.bf16.mxu0 %v231
      %258 = vmatpush1.bf16.msra.mxu0 %v230
      %259 = vmatprep.subr.bf16.mxu0 %v233
      %260 = vmatpush1.bf16.msra.mxu0 %v232
      %261 = vmatprep.subr.bf16.mxu0 %v235
      %262 = vmatpush1.bf16.msra.mxu0 %v234
      %263 = vmatprep.subr.bf16.mxu0 0
      %264 = vmatpush1.bf16.msra.mxu0 0
      %265 = vmatprep.subr.bf16.mxu0 0
      %266 = vmatpush1.bf16.msra.mxu0 0
      %267 = vmatprep.subr.bf16.mxu0 0
      %268 = vmatpush1.bf16.msra.mxu0 0
      %269 = vmatprep.subr.bf16.mxu0 0
      %270 = vmatpush1.bf16.msra.mxu0 0
      %271 = vmatprep.subr.bf16.mxu0 0
      %272 = vmatpush1.bf16.msra.mxu0 0
      %273 = vmatprep.subr.bf16.mxu0 0
      %274 = vmatpush1.bf16.msra.mxu0 0
      %275 = vmatprep.subr.bf16.mxu0 0
      %276 = vmatpush1.bf16.msra.mxu0 0
      %277 = vmatprep.subr.bf16.mxu0 0
      %278 = vmatpush1.bf16.msra.mxu0 0
      %279 = vmatprep.subr.bf16.mxu0 0
      %280 = vmatpush1.bf16.msra.mxu0 0
      %281 = vmatprep.subr.bf16.mxu0 0
      %282 = vmatpush1.bf16.msra.mxu0 0
      %283 = vmatprep.subr.bf16.mxu0 0
      %284 = vmatpush1.bf16.msra.mxu0 0
      %285 = vmatprep.mubr.bf16.mxu0 0
      %286 = vmatmul.mubr.bf16.gmra.mrb[0].mxu0 %v248
      %v287 = vpop.f32.mrb[0].mxu0
      %v288 = vadd.f32 0.0, %v287
      %v289 = vpop.f32.mrb[0].mxu0
      %v290 = vadd.f32 0.0, %v289
      %v291 = vpop.f32.mrb[0].mxu0
      %v292 = vadd.f32 0.0, %v291
      %v293 = vpop.f32.mrb[0].mxu0
      %v294 = vadd.f32 0.0, %v293
      %295 = vmatprep.mubr.bf16.mxu0 0
      %296 = vmatmul.mubr.bf16.gmra.mrb[0].mxu0 %v251
      %v297 = vpop.f32.mrb[0].mxu0
      %v298 = vadd.f32 0.0, %v297
      %v299 = vpop.f32.mrb[0].mxu0
      %v300 = vadd.f32 0.0, %v299
      %v301 = vpop.f32.mrb[0].mxu0
      %v302 = vadd.f32 0.0, %v301
      %v303 = vpop.f32.mrb[0].mxu0
      %v304 = vadd.f32 0.0, %v303
      %305 = vdwg.mxu0
      %v306 = vld [vmem:[%s165 + $0x10] sm:$0xff]
      %v307 = vld [vmem:[%s165 + $0x18] sm:$0xff]
      %v308 = vld [vmem:[%s165 + $0x20] sm:$0xff]
      %v309 = vld [vmem:[%s165 + $0x28] sm:$0xff]
      %v310 = vld [vmem:[%s165 + $0x30] sm:$0xff]
      %v311 = vld [vmem:[%s165 + $0x38] sm:$0xff]
      %v312 = vld [vmem:[%s165 + $0x40] sm:$0xff]
      %v313 = vld [vmem:[%s165 + $0x48] sm:$0xff]
      %v314 = vld [vmem:[%s165 + $0x50] sm:$0xff]
      %v315 = vld [vmem:[%s165 + $0x58] sm:$0xff]
      %v326 = vunpack.c.l.b16 %v306
      %v327 = vunpack.c.h.b16 %v306
      %v328 = vunpack.c.l.b16 %v307
      %v329 = vunpack.c.h.b16 %v307
      %v330 = vunpack.c.l.b16 %v308
      %v331 = vunpack.c.h.b16 %v308
      %v332 = vunpack.c.l.b16 %v309
      %v333 = vunpack.c.h.b16 %v309
      %v334 = vunpack.c.l.b16 %v310
      %v335 = vunpack.c.h.b16 %v310
      %v336 = vunpack.c.l.b16 %v311
      %v337 = vunpack.c.h.b16 %v311
      %v338 = vunpack.c.l.b16 %v312
      %v339 = vunpack.c.h.b16 %v312
      %v340 = vunpack.c.l.b16 %v313
      %v341 = vunpack.c.h.b16 %v313
      %v342 = vunpack.c.l.b16 %v314
      %v343 = vunpack.c.h.b16 %v314
      %v344 = vunpack.c.l.b16 %v315
      %v345 = vunpack.c.h.b16 %v315
      %v346 = vpack.c.b16 %v328, %v326
      %v347 = vpack.c.b16 %v329, %v327
      %v348 = vpack.c.b16 %v332, %v330
      %v349 = vpack.c.b16 %v333, %v331
      %v350 = vpack.c.b16 %v336, %v334
      %v351 = vpack.c.b16 %v337, %v335
      %v352 = vpack.c.b16 %v340, %v338
      %v353 = vpack.c.b16 %v341, %v339
      %v354 = vpack.c.b16 %v344, %v342
      %v355 = vpack.c.b16 %v345, %v343
      %366 = vmatprep.subr.bf16.mxu0 %v347
      %367 = vmatpush1.bf16.msra.mxu0 %v346
      %368 = vmatprep.subr.bf16.mxu0 %v349
      %369 = vmatpush1.bf16.msra.mxu0 %v348
      %370 = vmatprep.subr.bf16.mxu0 %v351
      %371 = vmatpush1.bf16.msra.mxu0 %v350
      %372 = vmatprep.subr.bf16.mxu0 %v353
      %373 = vmatpush1.bf16.msra.mxu0 %v352
      %374 = vmatprep.subr.bf16.mxu0 %v355
      %375 = vmatpush1.bf16.msra.mxu0 %v354
      %376 = vmatprep.subr.bf16.mxu0 0
      %377 = vmatpush1.bf16.msra.mxu0 0
      %378 = vmatprep.subr.bf16.mxu0 0
      %379 = vmatpush1.bf16.msra.mxu0 0
      %380 = vmatprep.subr.bf16.mxu0 0
      %381 = vmatpush1.bf16.msra.mxu0 0
      %382 = vmatprep.subr.bf16.mxu0 0
      %383 = vmatpush1.bf16.msra.mxu0 0
      %384 = vmatprep.subr.bf16.mxu0 0
      %385 = vmatpush1.bf16.msra.mxu0 0
      %386 = vmatprep.subr.bf16.mxu0 0
      %387 = vmatpush1.bf16.msra.mxu0 0
      %388 = vmatprep.subr.bf16.mxu0 0
      %389 = vmatpush1.bf16.msra.mxu0 0
      %390 = vmatprep.subr.bf16.mxu0 0
      %391 = vmatpush1.bf16.msra.mxu0 0
      %392 = vmatprep.subr.bf16.mxu0 0
      %393 = vmatpush1.bf16.msra.mxu0 0
      %394 = vmatprep.subr.bf16.mxu0 0
      %395 = vmatpush1.bf16.msra.mxu0 0
      %396 = vmatprep.subr.bf16.mxu0 0
      %397 = vmatpush1.bf16.msra.mxu0 0
      %398 = vmatprep.mubr.bf16.mxu0 0
      %399 = vmatmul.mubr.bf16.gmra.mrb[0].mxu0 %v248
      %v400 = vpop.f32.mrb[0].mxu0
      %v401 = vadd.f32 0.0, %v400
      %v402 = vpop.f32.mrb[0].mxu0
      %v403 = vadd.f32 0.0, %v402
      %v404 = vpop.f32.mrb[0].mxu0
      %v405 = vadd.f32 0.0, %v404
      %v406 = vpop.f32.mrb[0].mxu0
      %v407 = vadd.f32 0.0, %v406
      %408 = vmatprep.mubr.bf16.mxu0 0
      %409 = vmatmul.mubr.bf16.gmra.mrb[0].mxu0 %v251
      %v410 = vpop.f32.mrb[0].mxu0
      %v411 = vadd.f32 0.0, %v410
      %v412 = vpop.f32.mrb[0].mxu0
      %v413 = vadd.f32 0.0, %v412
      %v414 = vpop.f32.mrb[0].mxu0
      %v415 = vadd.f32 0.0, %v414
      %v416 = vpop.f32.mrb[0].mxu0
      %v417 = vadd.f32 0.0, %v416
      %418 = vdwg.mxu0
      %v419 = vmax.f32 %v288, %v401
      %v420 = vmax.f32 %v290, %v403
      %v421 = vmax.f32 %v292, %v405
      %v422 = vmax.f32 %v294, %v407
      %v423 = vmax.f32 %v298, %v411
      %v424 = vmax.f32 %v300, %v413
      %v425 = vmax.f32 %v302, %v415
      %v426 = vmax.f32 %v304, %v417
      %v427 = vmax.f32 %v419, %v423
      %v428 = vmax.f32 %v420, %v424
      %v429 = vmax.f32 %v421, %v425
      %v430 = vmax.f32 %v422, %v426
      %v431 = vld [vmem:[%s2] sm:$0xff]
      %v432 = vld [vmem:[%s2 + $0x8] sm:$0xff]
      %434 = vset.pattern.permute.xlu0 0
      %435 = vperm.xlu0 %434, %v431
      %v436 = vpop.permute.xlu0 %435
      %439 = vset.pattern.permute.xlu0 0
      %440 = vperm.xlu0 %439, %v432
      %v441 = vpop.permute.xlu0 %440
      %v443 = vadd.f32 %v427, %v436
      %v444 = vadd.f32 %v428, %v436
      %v445 = vadd.f32 %v429, %v441
      %v446 = vadd.f32 %v430, %v441
      %v447 = vmax.f32 %v443, 0.0
      %v448 = vmax.f32 %v444, 0.0
      %v449 = vmax.f32 %v445, 0.0
      %v450 = vmax.f32 %v446, 0.0
      %451 = vst [vmem:[%s170] sm:$0xff] %v447
      %vm452 = vcmask 556032
      %453 = vst.msk [vmem:[%s170 + $0x8] sm:$0xff] %vm452, %v448
      %454 = vst [vmem:[%s170 + $0x10] sm:$0xff] %v449
      %455 = vst.msk [vmem:[%s170 + $0x18] sm:$0xff] %vm452, %v450
      %p456 = scmp.lt.s32.totalorder %s14, 1
      %s457 = scalar_select %p456, %s14, 1
      %s458 = smul.addr %s457, 4
      %s459 = smul.addr %s458, 8
      %s460 = scalar_lea.vmem %s3, %s459
      // Predicated region
      $region33: #{cnn_forward.3} parent=31 // pred_check
        %p461 = pneg %p100
      $region34: #{cnn_forward.3} parent=31 // pred_check_branch
        %463 = sbr.rel (%p461) target = $region36
      $region35: #{cnn_forward.3} parent=31 // pred_region
        _
      $region36: #{cnn_forward.3} parent=31 // pred_fallthru
        _
    $region32: #{cnn_forward.3} parent=5 // pred_fallthru
      _
    %p464 = scmp.le.s32.totalorder 2, %s9
    // Predicated region
    $region37: #{cnn_forward.3} parent=5 // pred_check
      %p465 = pneg %p464
    $region38: #{cnn_forward.3} parent=5 // pred_check_branch
      %467 = sbr.rel (%p465) target = $region40
    $region39: #{cnn_forward.3} parent=5 // pred_region
      %s468 = ssub.s32 %s9, 2
      // Predicated region
      $region41: #{cnn_forward.3} parent=39 // pred_check
        %p469 = pneg %p106
      $region42: #{cnn_forward.3} parent=39 // pred_check_branch
        %471 = sbr.rel (%p469) target = $region44
      $region43: #{cnn_forward.3} parent=39 // pred_region
        %p472 = scmp.lt.s32.totalorder %s15, 1
        %s473 = scalar_select %p472, %s15, 1
        %s474 = smul.addr %s473, 4
        %s475 = smul.addr %s474, 8
        %s476 = scalar_lea.vmem %s3, %s475
      $region44: #{cnn_forward.3} parent=39 // pred_fallthru
        _
    $region40: #{cnn_forward.3} parent=5 // pred_fallthru
      _
  $region6: #{cnn_forward.3} parent=0 // loop_footer
    %s13 = sadd.s32 1, %s9
  $region7: #{cnn_forward.3} parent=0 // loop_footer_branch
    %8 = sbr.rel target = $region3
  $region8: #{cnn_forward.3} parent=0 // loop_exit
    _

// kernel: cnn_forward.4
$region0: #{cnn_forward.4}
  #allocation0 [shape = 'u32[]', space=smem, size = 0x4, offset = 0x4, fixed_abs, tag = 'smem constant byte address 0x4 - core index']
  #allocation1 [shape = 'u32[144,128]{1,0:T(1,128)}', space=vmem, size = 0x12000, scoped, tag = 'internal scratch']
  %s0 = inlined_call_operand.vmem [shape: bf16[2,576,49], index: 0, kind: input, shape index: {}]
  %s1 = inlined_call_operand.vmem [shape: bf16[64,480], index: 1, kind: input, shape index: {}]
  %s2 = inlined_call_operand.vmem [shape: f32[32,1], index: 2, kind: input, shape index: {}]
  %s3 = inlined_call_operand.vmem [shape: f32[2,32,49], index: 3, kind: output, shape index: {}]
  %s4 = sld [smem:[#allocation0]]
  $region45: #{cnn_forward.4} parent=0
    _
  %s6 = ssub.s32 1, %s4
  %s7 = scalar_select 0, %s6, %s4
  loop: start=0, step=1, limit=4
  $region2: #{cnn_forward.4} parent=0 // loop_pre_header
    _
  $region3: #{cnn_forward.4} parent=0 // loop_header
    %s9 = sphi 0, %s13
    %p10 = scmp.ge.s32.totalorder %s9, 4
    %s19 = sphi 0, %s21
    %s22 = sphi 0, %s19
    %s23 = sphi 0, %s22
    %s39 = sphi 0, %s23
    %s43 = sphi 0, %s43
    %s45 = sphi 0, %s43
    %s46 = sphi 0, %s45
    %s60 = sphi 0, %s46
    %s64 = sphi 0, %s64
    %s66 = sphi 0, %s64
    %s67 = sphi 0, %s66
    %s81 = sphi 0, %s67
    %s87 = sphi 0, %s89
    %s90 = sphi 0, %s87
    %s91 = sphi 0, %s90
    %s107 = sphi 0, %s91
  $region4: #{cnn_forward.4} parent=0 // loop_header_branch
    %12 = sbr.rel (%p10) target = $region8
  $region5: #{cnn_forward.4} parent=0 // loop_body
    %s14 = ssub.s32 %s9, 1
    %s15 = ssub.s32 %s9, 2
    %s16 = sadd.s32 %s9, 1
    %s17 = ssub.s32 %s9, %s16
    %p18 = scmp.eq.s32.totalorder %s17, 0
    %s20 = sadd.s32 %s19, 1
    %s21 = scalar_select %p18, %s19, %s20
    %p24 = pneg %p18
    %p25 = scmp.eq.s32.totalorder %s9, 1
    %p26 = por %p24, %p25
    %p27 = scmp.ne.s32.totalorder %s19, %s22
    %p28 = scmp.eq.s32.totalorder %s9, 0
    %p29 = por %p27, %p28
    %p30 = scmp.ne.s32.totalorder %s19, %s22
    %p31 = scmp.eq.s32.totalorder %s14, 1
    %p32 = por %p30, %p31
    %p33 = scmp.ne.s32.totalorder %s22, %s23
    %p34 = scmp.eq.s32.totalorder %s14, 0
    %p35 = por %p33, %p34
    %p36 = scmp.ne.s32.totalorder %s22, %s23
    %p37 = scmp.eq.s32.totalorder %s15, 1
    %p38 = por %p36, %p37
    %p40 = scmp.ne.s32.totalorder %s23, %s39
    %p41 = scmp.eq.s32.totalorder %s15, 0
    %p42 = por %p40, %p41
    %s44 = sadd.s32 %s43, 1
    %p47 = scmp.eq.s32.totalorder %s9, 1
    %p48 = scmp.ne.s32.totalorder %s43, %s45
    %p49 = scmp.eq.s32.totalorder %s9, 0
    %p50 = por %p48, %p49
    %p51 = scmp.ne.s32.totalorder %s43, %s45
    %p52 = scmp.eq.s32.totalorder %s14, 1
    %p53 = por %p51, %p52
    %p54 = scmp.ne.s32.totalorder %s45, %s46
    %p55 = scmp.eq.s32.totalorder %s14, 0
    %p56 = por %p54, %p55
    %p57 = scmp.ne.s32.totalorder %s45, %s46
    %p58 = scmp.eq.s32.totalorder %s15, 1
    %p59 = por %p57, %p58
    %p61 = scmp.ne.s32.totalorder %s46, %s60
    %p62 = scmp.eq.s32.totalorder %s15, 0
    %p63 = por %p61, %p62
    %s65 = sadd.s32 %s64, 1
    %p68 = scmp.eq.s32.totalorder %s9, 1
    %p69 = scmp.ne.s32.totalorder %s64, %s66
    %p70 = scmp.eq.s32.totalorder %s9, 0
    %p71 = por %p69, %p70
    %p72 = scmp.ne.s32.totalorder %s64, %s66
    %p73 = scmp.eq.s32.totalorder %s14, 1
    %p74 = por %p72, %p73
    %p75 = scmp.ne.s32.totalorder %s66, %s67
    %p76 = scmp.eq.s32.totalorder %s14, 0
    %p77 = por %p75, %p76
    %p78 = scmp.ne.s32.totalorder %s66, %s67
    %p79 = scmp.eq.s32.totalorder %s15, 1
    %p80 = por %p78, %p79
    %p82 = scmp.ne.s32.totalorder %s67, %s81
    %p83 = scmp.eq.s32.totalorder %s15, 0
    %p84 = por %p82, %p83
    %s85 = ssub.s32 %s9, %s16
    %p86 = scmp.eq.s32.totalorder %s85, 0
    %s88 = sadd.s32 %s87, 1
    %s89 = scalar_select %p86, %s87, %s88
    %p92 = pneg %p86
    %p93 = scmp.eq.s32.totalorder %s9, 1
    %p94 = por %p92, %p93
    %p95 = scmp.ne.s32.totalorder %s87, %s90
    %p96 = scmp.eq.s32.totalorder %s9, 0
    %p97 = por %p95, %p96
    %p98 = scmp.ne.s32.totalorder %s87, %s90
    %p99 = scmp.eq.s32.totalorder %s14, 1
    %p100 = por %p98, %p99
    %p101 = scmp.ne.s32.totalorder %s90, %s91
    %p102 = scmp.eq.s32.totalorder %s14, 0
    %p103 = por %p101, %p102
    %p104 = scmp.ne.s32.totalorder %s90, %s91
    %p105 = scmp.eq.s32.totalorder %s15, 1
    %p106 = por %p104, %p105
    %p108 = scmp.ne.s32.totalorder %s91, %s107
    %p109 = scmp.eq.s32.totalorder %s15, 0
    %p110 = por %p108, %p109
    %p111 = scmp.le.s32.totalorder 1, %s9
    %p112 = scmp.lt.s32.totalorder %s9, 3
    %p113 = pnand %p111, %p112
    %p114 = pneg %p113
    // Predicated region
    $region9: #{cnn_forward.4} parent=5 // pred_check
      _
    $region10: #{cnn_forward.4} parent=5 // pred_check_branch
      %116 = sbr.rel (%p113) target = $region12
    $region11: #{cnn_forward.4} parent=5 // pred_region
      %s117 = ssub.s32 %s9, 1
      // Predicated region
      $region13: #{cnn_forward.4} parent=11 // pred_check
        %p118 = pneg %p56
      $region14: #{cnn_forward.4} parent=11 // pred_check_branch
        %120 = sbr.rel (%p118) target = $region16
      $region15: #{cnn_forward.4} parent=11 // pred_region
        _
      $region16: #{cnn_forward.4} parent=11 // pred_fallthru
        _
      // Predicated region
      $region17: #{cnn_forward.4} parent=11 // pred_check
        %p121 = pneg %p77
      $region18: #{cnn_forward.4} parent=11 // pred_check_branch
        %123 = sbr.rel (%p121) target = $region20
      $region19: #{cnn_forward.4} parent=11 // pred_region
        _
      $region20: #{cnn_forward.4} parent=11 // pred_fallthru
        _
    $region12: #{cnn_forward.4} parent=5 // pred_fallthru
      _
    %p124 = scmp.lt.s32.totalorder %s9, 2
    // Predicated region
    $region21: #{cnn_forward.4} parent=5 // pred_check
      %p125 = pneg %p124
    $region22: #{cnn_forward.4} parent=5 // pred_check_branch
      %127 = sbr.rel (%p125) target = $region24
    $region23: #{cnn_forward.4} parent=5 // pred_region
      // Predicated region
      $region25: #{cnn_forward.4} parent=23 // pred_check
        %p128 = pneg %p29
      $region26: #{cnn_forward.4} parent=23 // pred_check_branch
        %130 = sbr.rel (%p128) target = $region28
      $region27: #{cnn_forward.4} parent=23 // pred_region
        %p131 = scmp.lt.s32.totalorder %s9, 1
        %s132 = scalar_select %p131, %s9, 1
        %s133 = smul.addr %s132, 72
        %s134 = smul.addr %s133, 4
        %s135 = scalar_lea.vmem %s0, %s134
      $region28: #{cnn_forward.4} parent=23 // pred_fallthru
        _
    $region24: #{cnn_forward.4} parent=5 // pred_fallthru
      _
    %p136 = scmp.le.s32.totalorder 1, %s9
    %p137 = scmp.lt.s32.totalorder %s9, 3
    %p138 = pnand %p136, %p137
    %p139 = pneg %p138
    // Predicated region
    $region29: #{cnn_forward.4} parent=5 // pred_check
      _
    $region30: #{cnn_forward.4} parent=5 // pred_check_branch
      %141 = sbr.rel (%p138) target = $region32
    $region31: #{cnn_forward.4} parent=5 // pred_region
      %s142 = ssub.s32 %s9, 1
      %p143 = scmp.lt.s32.totalorder %s14, 1
      %s144 = scalar_select %p143, %s14, 1
      %s145 = smul.addr %s144, 72
      %s146 = smul.addr %s145, 4
      %s147 = scalar_lea.vmem %s0, %s146
      %p148 = pneg %p35
      %p149 = pneg %p32
      %p150 = pneg %p56
      %p151 = pneg %p53
      %p152 = pneg %p77
      %p153 = pneg %p74
      %p154 = pneg %p103
      %p155 = pneg %p100
      %p156 = scmp.lt.s32.totalorder %s14, 1
      %s157 = scalar_select %p156, %s14, 1
      %s158 = smul.addr %s157, 4
      %s159 = smul.addr %s158, 8
      %s160 = scalar_lea.vmem %s3, %s159
      %p161 = scmp.lt.s32.totalorder %s14, 1
      %s162 = scalar_select %p161, %s14, 1
      %s163 = smul.addr %s162, 72
      %s164 = smul.addr %s163, 4
      %s165 = scalar_lea.vmem %s0, %s164
      %p166 = scmp.lt.s32.totalorder %s14, 1
      %s167 = scalar_select %p166, %s14, 1
      %s168 = smul.addr %s167, 4
      %s169 = smul.addr %s168, 8
      %s170 = scalar_lea.vmem %s3, %s169
      %v172 = vld [vmem:[%s1] sm:$0xff]
      %v173 = vld [vmem:[%s1 + $0x8] sm:$0xff]
      %v174 = vld [vmem:[%s1 + $0x10] sm:$0xff]
      %v175 = vld [vmem:[%s1 + $0x18] sm:$0xff]
      %v176 = vld [vmem:[%s1 + $0x20] sm:$0xff]
      %v177 = vld [vmem:[%s1 + $0x28] sm:$0xff]
      %v178 = vld [vmem:[%s1 + $0x30] sm:$0xff]
      %v179 = vld [vmem:[%s1 + $0x38] sm:$0xff]
      %v180 = vld [vmem:[%s1 + $0x40] sm:$0xff]
      %v181 = vld [vmem:[%s1 + $0x48] sm:$0xff]
      %v182 = vld [vmem:[%s1 + $0x50] sm:$0xff]
      %v183 = vld [vmem:[%s1 + $0x58] sm:$0xff]
      %v184 = vld [vmem:[%s1 + $0x60] sm:$0xff]
      %v185 = vld [vmem:[%s1 + $0x68] sm:$0xff]
      %v186 = vld [vmem:[%s1 + $0x70] sm:$0xff]
      %v187 = vld [vmem:[%s1 + $0x78] sm:$0xff]
      %v188 = vld [vmem:[%s165] sm:$0xf]
      %v189 = vld [vmem:[%s165 + $0x4] sm:$0xf]
      %v190 = vld [vmem:[%s165 + $0x8] sm:$0xf]
      %v191 = vld [vmem:[%s165 + $0xc] sm:$0xf]
      %v192 = vld [vmem:[%s165 + $0x10] sm:$0xf]
      %v193 = vld [vmem:[%s165 + $0x14] sm:$0xf]
      %v194 = vld [vmem:[%s165 + $0x18] sm:$0xf]
      %v195 = vld [vmem:[%s165 + $0x1c] sm:$0xf]
      %v196 = vld [vmem:[%s165 + $0x20] sm:$0xf]
      %v197 = vld [vmem:[%s165 + $0x24] sm:$0xf]
      %v198 = vld [vmem:[%s165 + $0x28] sm:$0xf]
      %v199 = vld [vmem:[%s165 + $0x2c] sm:$0xf]
      %v200 = vld [vmem:[%s165 + $0x30] sm:$0xf]
      %v201 = vld [vmem:[%s165 + $0x34] sm:$0xf]
      %v202 = vld [vmem:[%s165 + $0x38] sm:$0xf]
      %v203 = vld [vmem:[%s165 + $0x3c] sm:$0xf]
      %v204 = vld [vmem:[%s165 + $0x40] sm:$0xf]
      %v205 = vld [vmem:[%s165 + $0x44] sm:$0xf]
      %v206 = vld [vmem:[%s165 + $0x48] sm:$0xf]
      %v207 = vld [vmem:[%s165 + $0x4c] sm:$0xf]
      %v208 = vld [vmem:[%s165 + $0x50] sm:$0xf]
      %v209 = vld [vmem:[%s165 + $0x54] sm:$0xf]
      %v210 = vld [vmem:[%s165 + $0x58] sm:$0xf]
      %v211 = vld [vmem:[%s165 + $0x5c] sm:$0xf]
      %v212 = vld [vmem:[%s165 + $0x60] sm:$0xf]
      %v213 = vld [vmem:[%s165 + $0x64] sm:$0xf]
      %v214 = vld [vmem:[%s165 + $0x68] sm:$0xf]
      %v215 = vld [vmem:[%s165 + $0x6c] sm:$0xf]
      %v216 = vld [vmem:[%s165 + $0x70] sm:$0xf]
      %v217 = vld [vmem:[%s165 + $0x74] sm:$0xf]
      %v218 = vld [vmem:[%s165 + $0x78] sm:$0xf]
      %v219 = vld [vmem:[%s165 + $0x7c] sm:$0xf]
      %v220 = vld [vmem:[%s165 + $0x80] sm:$0xf]
      %v221 = vld [vmem:[%s165 + $0x84] sm:$0xf]
      %v222 = vld [vmem:[%s165 + $0x88] sm:$0xf]
      %v223 = vld [vmem:[%s165 + $0x8c] sm:$0xf]
      %v224 = vld [vmem:[%s165 + $0x90] sm:$0xf]
      %v225 = vld [vmem:[%s165 + $0x94] sm:$0xf]
      %v226 = vld [vmem:[%s165 + $0x98] sm:$0xf]
      %v227 = vld [vmem:[%s165 + $0x9c] sm:$0xf]
      %v228 = vld [vmem:[%s165 + $0xa0] sm:$0xf]
      %v229 = vld [vmem:[%s165 + $0xa4] sm:$0xf]
      %v230 = vld [vmem:[%s165 + $0xa8] sm:$0xf]
      %v231 = vld [vmem:[%s165 + $0xac] sm:$0xf]
      %v232 = vld [vmem:[%s165 + $0xb0] sm:$0xf]
      %v233 = vld [vmem:[%s165 + $0xb4] sm:$0xf]
      %v234 = vld [vmem:[%s165 + $0xb8] sm:$0xf]
      %v235 = vld [vmem:[%s165 + $0xbc] sm:$0xf]
      %v236 = vld [vmem:[%s165 + $0xc0] sm:$0xf]
      %v237 = vld [vmem:[%s165 + $0xc4] sm:$0xf]
      %v238 = vld [vmem:[%s165 + $0xc8] sm:$0xf]
      %v239 = vld [vmem:[%s165 + $0xcc] sm:$0xf]
      %v240 = vld [vmem:[%s165 + $0xd0] sm:$0xf]
      %v241 = vld [vmem:[%s165 + $0xd4] sm:$0xf]
      %v242 = vld [vmem:[%s165 + $0xd8] sm:$0xf]
      %v243 = vld [vmem:[%s165 + $0xdc] sm:$0xf]
      %v244 = vld [vmem:[%s165 + $0xe0] sm:$0xf]
      %v245 = vld [vmem:[%s165 + $0xe4] sm:$0xf]
      %v246 = vld [vmem:[%s165 + $0xe8] sm:$0xf]
      %v247 = vld [vmem:[%s165 + $0xec] sm:$0xf]
      %v264 = vunpack.c.l.b16 %v172
      %v265 = vunpack.c.h.b16 %v172
      %v266 = vunpack.c.l.b16 %v173
      %v267 = vunpack.c.h.b16 %v173
      %v268 = vunpack.c.l.b16 %v174
      %v269 = vunpack.c.h.b16 %v174
      %v270 = vunpack.c.l.b16 %v175
      %v271 = vunpack.c.h.b16 %v175
      %v272 = vunpack.c.l.b16 %v176
      %v273 = vunpack.c.h.b16 %v176
      %v274 = vunpack.c.l.b16 %v177
      %v275 = vunpack.c.h.b16 %v177
      %v276 = vunpack.c.l.b16 %v178
      %v277 = vunpack.c.h.b16 %v178
      %v278 = vunpack.c.l.b16 %v179
      %v279 = vunpack.c.h.b16 %v179
      %v280 = vunpack.c.l.b16 %v180
      %v281 = vunpack.c.h.b16 %v180
      %v282 = vunpack.c.l.b16 %v181
      %v283 = vunpack.c.h.b16 %v181
      %v284 = vunpack.c.l.b16 %v182
      %v285 = vunpack.c.h.b16 %v182
      %v286 = vunpack.c.l.b16 %v183
      %v287 = vunpack.c.h.b16 %v183
      %v288 = vunpack.c.l.b16 %v184
      %v289 = vunpack.c.h.b16 %v184
      %v290 = vunpack.c.l.b16 %v185
      %v291 = vunpack.c.h.b16 %v185
      %v292 = vunpack.c.l.b16 %v186
      %v293 = vunpack.c.h.b16 %v186
      %v294 = vunpack.c.l.b16 %v187
      %v295 = vunpack.c.h.b16 %v187
      %v296 = vpack.c.b16 %v268, %v264
      %v297 = vpack.c.b16 %v269, %v265
      %v298 = vpack.c.b16 %v270, %v266
      %v299 = vpack.c.b16 %v271, %v267
      %v300 = vpack.c.b16 %v276, %v272
      %v301 = vpack.c.b16 %v277, %v273
      %v302 = vpack.c.b16 %v278, %v274
      %v303 = vpack.c.b16 %v279, %v275
      %v304 = vpack.c.b16 %v284, %v280
      %v305 = vpack.c.b16 %v285, %v281
      %v306 = vpack.c.b16 %v286, %v282
      %v307 = vpack.c.b16 %v287, %v283
      %v308 = vpack.c.b16 %v292, %v288
      %v309 = vpack.c.b16 %v293, %v289
      %v310 = vpack.c.b16 %v294, %v290
      %v311 = vpack.c.b16 %v295, %v291
      %v384 = vunpack.c.l.b16 %v188
      %v385 = vunpack.c.l.b16 %v189
      %v386 = vunpack.c.l.b16 %v190
      %v387 = vunpack.c.l.b16 %v191
      %v388 = vunpack.c.l.b16 %v192
      %v389 = vunpack.c.l.b16 %v193
      %v390 = vunpack.c.l.b16 %v194
      %v391 = vunpack.c.l.b16 %v195
      %v392 = vunpack.c.l.b16 %v196
      %v393 = vunpack.c.l.b16 %v197
      %v394 = vunpack.c.l.b16 %v198
      %v395 = vunpack.c.l.b16 %v199
      %v396 = vunpack.c.l.b16 %v200
      %v397 = vunpack.c.l.b16 %v201
      %v398 = vunpack.c.l.b16 %v202
      %v399 = vunpack.c.l.b16 %v203
      %v400 = vunpack.c.l.b16 %v204
      %v401 = vunpack.c.l.b16 %v205
      %v402 = vunpack.c.l.b16 %v206
      %v403 = vunpack.c.l.b16 %v207
      %v404 = vunpack.c.l.b16 %v208
      %v405 = vunpack.c.l.b16 %v209
      %v406 = vunpack.c.l.b16 %v210
      %v407 = vunpack.c.l.b16 %v211
      %v408 = vunpack.c.l.b16 %v212
      %v409 = vunpack.c.l.b16 %v213
      %v410 = vunpack.c.l.b16 %v214
      %v411 = vunpack.c.l.b16 %v215
      %v412 = vunpack.c.l.b16 %v216
      %v413 = vunpack.c.l.b16 %v217
      %v414 = vunpack.c.l.b16 %v218
      %v415 = vunpack.c.l.b16 %v219
      %v416 = vunpack.c.l.b16 %v220
      %v417 = vunpack.c.l.b16 %v221
      %v418 = vunpack.c.l.b16 %v222
      %v419 = vunpack.c.l.b16 %v223
      %v420 = vunpack.c.l.b16 %v224
      %v421 = vunpack.c.l.b16 %v225
      %v422 = vunpack.c.l.b16 %v226
      %v423 = vunpack.c.l.b16 %v227
      %v424 = vunpack.c.l.b16 %v228
      %v425 = vunpack.c.l.b16 %v229
      %v426 = vunpack.c.l.b16 %v230
      %v427 = vunpack.c.l.b16 %v231
      %v428 = vunpack.c.l.b16 %v232
      %v429 = vunpack.c.l.b16 %v233
      %v430 = vunpack.c.l.b16 %v234
      %v431 = vunpack.c.l.b16 %v235
      %v432 = vunpack.c.l.b16 %v236
      %v433 = vunpack.c.l.b16 %v237
      %v434 = vunpack.c.l.b16 %v238
      %v435 = vunpack.c.l.b16 %v239
      %v436 = vunpack.c.l.b16 %v240
      %v437 = vunpack.c.l.b16 %v241
      %v438 = vunpack.c.l.b16 %v242
      %v439 = vunpack.c.l.b16 %v243
      %v440 = vunpack.c.l.b16 %v244
      %v441 = vunpack.c.l.b16 %v245
      %v442 = vunpack.c.l.b16 %v246
      %v443 = vunpack.c.l.b16 %v247
      %v444 = vpack.c.b16 %v385, %v384
      %v445 = vpack.c.b16 %v387, %v386
      %v446 = vpack.c.b16 %v389, %v388
      %v447 = vpack.c.b16 %v391, %v390
      %v448 = vpack.c.b16 %v393, %v392
      %v449 = vpack.c.b16 %v395, %v394
      %v450 = vpack.c.b16 %v397, %v396
      %v451 = vpack.c.b16 %v399, %v398
      %v452 = vpack.c.b16 %v401, %v400
      %v453 = vpack.c.b16 %v403, %v402
      %v454 = vpack.c.b16 %v405, %v404
      %v455 = vpack.c.b16 %v407, %v406
      %v456 = vpack.c.b16 %v409, %v408
      %v457 = vpack.c.b16 %v411, %v410
      %v458 = vpack.c.b16 %v413, %v412
      %v459 = vpack.c.b16 %v415, %v414
      %v460 = vpack.c.b16 %v417, %v416
      %v461 = vpack.c.b16 %v419, %v418
      %v462 = vpack.c.b16 %v421, %v420
      %v463 = vpack.c.b16 %v423, %v422
      %v464 = vpack.c.b16 %v425, %v424
      %v465 = vpack.c.b16 %v427, %v426
      %v466 = vpack.c.b16 %v429, %v428
      %v467 = vpack.c.b16 %v431, %v430
      %v468 = vpack.c.b16 %v433, %v432
      %v469 = vpack.c.b16 %v435, %v434
      %v470 = vpack.c.b16 %v437, %v436
      %v471 = vpack.c.b16 %v439, %v438
      %v472 = vpack.c.b16 %v441, %v440
      %v473 = vpack.c.b16 %v443, %v442
      %vm504 = vcmask 785408
      %v506 = vsel %vm504, %v299, 0
      %v509 = vsel %vm504, %v303, 0
      %v512 = vsel %vm504, %v307, 0
      %v515 = vsel %vm504, %v311, 0
      %517 = vmatprep.subr.bf16.mxu0 0
      %518 = vmatpush1.bf16.msra.mxu0 %v444
      %519 = vmatprep.subr.bf16.mxu0 0
      %520 = vmatpush1.bf16.msra.mxu0 %v445
      %521 = vmatprep.subr.bf16.mxu0 0
      %522 = vmatpush1.bf16.msra.mxu0 %v446
      %523 = vmatprep.subr.bf16.mxu0 0
      %524 = vmatpush1.bf16.msra.mxu0 %v447
      %525 = vmatprep.subr.bf16.mxu0 0
      %526 = vmatpush1.bf16.msra.mxu0 %v448
      %527 = vmatprep.subr.bf16.mxu0 0
      %528 = vmatpush1.bf16.msra.mxu0 %v449
      %529 = vmatprep.subr.bf16.mxu0 0
      %530 = vmatpush1.bf16.msra.mxu0 %v450
      %531 = vmatprep.subr.bf16.mxu0 0
      %532 = vmatpush1.bf16.msra.mxu0 %v451
      %533 = vmatprep.subr.bf16.mxu0 0
      %534 = vmatpush1.bf16.msra.mxu0 %v452
      %535 = vmatprep.subr.bf16.mxu0 0
      %536 = vmatpush1.bf16.msra.mxu0 %v453
      %537 = vmatprep.subr.bf16.mxu0 0
      %538 = vmatpush1.bf16.msra.mxu0 %v454
      %539 = vmatprep.subr.bf16.mxu0 0
      %540 = vmatpush1.bf16.msra.mxu0 %v455
      %541 = vmatprep.subr.bf16.mxu0 0
      %542 = vmatpush1.bf16.msra.mxu0 %v456
      %543 = vmatprep.subr.bf16.mxu0 0
      %544 = vmatpush1.bf16.msra.mxu0 %v457
      %545 = vmatprep.subr.bf16.mxu0 0
      %546 = vmatpush1.bf16.msra.mxu0 %v458
      %547 = vmatprep.subr.bf16.mxu0 0
      %548 = vmatpush1.bf16.msra.mxu0 %v459
      %549 = vmatprep.mubr.bf16.mxu0 %v297
      %550 = vmatmul.mubr.bf16.gmra.mrb[0].mxu0 %v296
      %v551 = vpop.f32.mrb[0].mxu0
      %v552 = vadd.f32 0.0, %v551
      %v553 = vpop.f32.mrb[0].mxu0
      %v554 = vpop.f32.mrb[0].mxu0
      %v555 = vadd.f32 0.0, %v554
      %v556 = vpop.f32.mrb[0].mxu0
      %557 = vmatprep.mubr.bf16.mxu0 %v301
      %558 = vmatmul.mubr.bf16.gmra.mrb[0].mxu0 %v300
      %v559 = vpop.f32.mrb[0].mxu0
      %v560 = vadd.f32 0.0, %v559
      %v561 = vpop.f32.mrb[0].mxu0
      %v562 = vpop.f32.mrb[0].mxu0
      %v563 = vadd.f32 0.0, %v562
      %v564 = vpop.f32.mrb[0].mxu0
      %565 = vmatprep.mubr.bf16.mxu0 %v305
      %566 = vmatmul.mubr.bf16.gmra.mrb[0].mxu0 %v304
      %v567 = vpop.f32.mrb[0].mxu0
      %v568 = vadd.f32 0.0, %v567
      %v569 = vpop.f32.mrb[0].mxu0
      %v570 = vpop.f32.mrb[0].mxu0
      %v571 = vadd.f32 0.0, %v570
      %v572 = vpop.f32.mrb[0].mxu0
      %573 = vmatprep.mubr.bf16.mxu0 %v309
      %574 = vmatmul.mubr.bf16.gmra.mrb[0].mxu0 %v308
      %v575 = vpop.f32.mrb[0].mxu0
      %v576 = vadd.f32 0.0, %v575
      %v577 = vpop.f32.mrb[0].mxu0
      %v578 = vpop.f32.mrb[0].mxu0
      %v579 = vadd.f32 0.0, %v578
      %v580 = vpop.f32.mrb[0].mxu0
      %581 = vdwg.mxu0
      %582 = vmatprep.subr.bf16.mxu0 0
      %583 = vmatpush1.bf16.msra.mxu0 %v460
      %584 = vmatprep.subr.bf16.mxu0 0
      %585 = vmatpush1.bf16.msra.mxu0 %v461
      %586 = vmatprep.subr.bf16.mxu0 0
      %587 = vmatpush1.bf16.msra.mxu0 %v462
      %588 = vmatprep.subr.bf16.mxu0 0
      %589 = vmatpush1.bf16.msra.mxu0 %v463
      %590 = vmatprep.subr.bf16.mxu0 0
      %591 = vmatpush1.bf16.msra.mxu0 %v464
      %592 = vmatprep.subr.bf16.mxu0 0
      %593 = vmatpush1.bf16.msra.mxu0 %v465
      %594 = vmatprep.subr.bf16.mxu0 0
      %595 = vmatpush1.bf16.msra.mxu0 %v466
      %596 = vmatprep.subr.bf16.mxu0 0
      %597 = vmatpush1.bf16.msra.mxu0 %v467
      %598 = vmatprep.subr.bf16.mxu0 0
      %599 = vmatpush1.bf16.msra.mxu0 %v468
      %600 = vmatprep.subr.bf16.mxu0 0
      %601 = vmatpush1.bf16.msra.mxu0 %v469
      %602 = vmatprep.subr.bf16.mxu0 0
      %603 = vmatpush1.bf16.msra.mxu0 %v470
      %604 = vmatprep.subr.bf16.mxu0 0
      %605 = vmatpush1.bf16.msra.mxu0 %v471
      %606 = vmatprep.subr.bf16.mxu0 0
      %607 = vmatpush1.bf16.msra.mxu0 %v472
      %608 = vmatprep.subr.bf16.mxu0 0
      %609 = vmatpush1.bf16.msra.mxu0 %v473
      %610 = vmatprep.subr.bf16.mxu0 0
      %611 = vmatpush1.bf16.msra.mxu0 0
      %612 = vmatprep.subr.bf16.mxu0 0
      %613 = vmatpush1.bf16.msra.mxu0 0
      %614 = vmatprep.mubr.bf16.mxu0 %v506
      %615 = vmatmul.mubr.bf16.gmra.mrb[0].mxu0 %v298
      %v616 = vpop.f32.mrb[0].mxu0
      %v617 = vadd.f32 %v552, %v616
      %v618 = vpop.f32.mrb[0].mxu0
      %v619 = vpop.f32.mrb[0].mxu0
      %v620 = vadd.f32 %v555, %v619
      %v621 = vpop.f32.mrb[0].mxu0
      %622 = vmatprep.mubr.bf16.mxu0 %v509
      %623 = vmatmul.mubr.bf16.gmra.mrb[0].mxu0 %v302
      %v624 = vpop.f32.mrb[0].mxu0
      %v625 = vadd.f32 %v560, %v624
      %v626 = vpop.f32.mrb[0].mxu0
      %v627 = vpop.f32.mrb[0].mxu0
      %v628 = vadd.f32 %v563, %v627
      %v629 = vpop.f32.mrb[0].mxu0
      %630 = vmatprep.mubr.bf16.mxu0 %v512
      %631 = vmatmul.mubr.bf16.gmra.mrb[0].mxu0 %v306
      %v632 = vpop.f32.mrb[0].mxu0
      %v633 = vadd.f32 %v568, %v632
      %v634 = vpop.f32.mrb[0].mxu0
      %v635 = vpop.f32.mrb[0].mxu0
      %v636 = vadd.f32 %v571, %v635
      %v637 = vpop.f32.mrb[0].mxu0
      %638 = vmatprep.mubr.bf16.mxu0 %v515
      %639 = vmatmul.mubr.bf16.gmra.mrb[0].mxu0 %v310
      %v640 = vpop.f32.mrb[0].mxu0
      %v641 = vadd.f32 %v576, %v640
      %v642 = vpop.f32.mrb[0].mxu0
      %v643 = vpop.f32.mrb[0].mxu0
      %v644 = vadd.f32 %v579, %v643
      %v645 = vpop.f32.mrb[0].mxu0
      %646 = vdwg.mxu0
      %v647 = vld [vmem:[%s165 + $0x30] sm:$0xf]
      %v648 = vld [vmem:[%s165 + $0x34] sm:$0xf]
      %v649 = vld [vmem:[%s165 + $0x38] sm:$0xf]
      %v650 = vld [vmem:[%s165 + $0x3c] sm:$0xf]
      %v651 = vld [vmem:[%s165 + $0x40] sm:$0xf]
      %v652 = vld [vmem:[%s165 + $0x44] sm:$0xf]
      %v653 = vld [vmem:[%s165 + $0x48] sm:$0xf]
      %v654 = vld [vmem:[%s165 + $0x4c] sm:$0xf]
      %v655 = vld [vmem:[%s165 + $0x50] sm:$0xf]
      %v656 = vld [vmem:[%s165 + $0x54] sm:$0xf]
      %v657 = vld [vmem:[%s165 + $0x58] sm:$0xf]
      %v658 = vld [vmem:[%s165 + $0x5c] sm:$0xf]
      %v659 = vld [vmem:[%s165 + $0x60] sm:$0xf]
      %v660 = vld [vmem:[%s165 + $0x64] sm:$0xf]
      %v661 = vld [vmem:[%s165 + $0x68] sm:$0xf]
      %v662 = vld [vmem:[%s165 + $0x6c] sm:$0xf]
      %v663 = vld [vmem:[%s165 + $0x70] sm:$0xf]
      %v664 = vld [vmem:[%s165 + $0x74] sm:$0xf]
      %v665 = vld [vmem:[%s165 + $0x78] sm:$0xf]
      %v666 = vld [vmem:[%s165 + $0x7c] sm:$0xf]
      %v667 = vld [vmem:[%s165 + $0x80] sm:$0xf]
      %v668 = vld [vmem:[%s165 + $0x84] sm:$0xf]
      %v669 = vld [vmem:[%s165 + $0x88] sm:$0xf]
      %v670 = vld [vmem:[%s165 + $0x8c] sm:$0xf]
      %v671 = vld [vmem:[%s165 + $0x90] sm:$0xf]
      %v672 = vld [vmem:[%s165 + $0x94] sm:$0xf]
      %v673 = vld [vmem:[%s165 + $0x98] sm:$0xf]
      %v674 = vld [vmem:[%s165 + $0x9c] sm:$0xf]
      %v675 = vld [vmem:[%s165 + $0xa0] sm:$0xf]
      %v676 = vld [vmem:[%s165 + $0xa4] sm:$0xf]
      %v677 = vld [vmem:[%s165 + $0xa8] sm:$0xf]
      %v678 = vld [vmem:[%s165 + $0xac] sm:$0xf]
      %v679 = vld [vmem:[%s165 + $0xb0] sm:$0xf]
      %v680 = vld [vmem:[%s165 + $0xb4] sm:$0xf]
      %v681 = vld [vmem:[%s165 + $0xb8] sm:$0xf]
      %v682 = vld [vmem:[%s165 + $0xbc] sm:$0xf]
      %v683 = vld [vmem:[%s165 + $0xc0] sm:$0xf]
      %v684 = vld [vmem:[%s165 + $0xc4] sm:$0xf]
      %v685 = vld [vmem:[%s165 + $0xc8] sm:$0xf]
      %v686 = vld [vmem:[%s165 + $0xcc] sm:$0xf]
      %v687 = vld [vmem:[%s165 + $0xd0] sm:$0xf]
      %v688 = vld [vmem:[%s165 + $0xd4] sm:$0xf]
      %v689 = vld [vmem:[%s165 + $0xd8] sm:$0xf]
      %v690 = vld [vmem:[%s165 + $0xdc] sm:$0xf]
      %v691 = vld [vmem:[%s165 + $0xe0] sm:$0xf]
      %v692 = vld [vmem:[%s165 + $0xe4] sm:$0xf]
      %v693 = vld [vmem:[%s165 + $0xe8] sm:$0xf]
      %v694 = vld [vmem:[%s165 + $0xec] sm:$0xf]
      %v695 = vld [vmem:[%s165 + $0xf0] sm:$0xf]
      %v696 = vld [vmem:[%s165 + $0xf4] sm:$0xf]
      %v697 = vld [vmem:[%s165 + $0xf8] sm:$0xf]
      %v698 = vld [vmem:[%s165 + $0xfc] sm:$0xf]
      %v699 = vld [vmem:[%s165 + $0x100] sm:$0xf]
      %v700 = vld [vmem:[%s165 + $0x104] sm:$0xf]
      %v701 = vld [vmem:[%s165 + $0x108] sm:$0xf]
      %v702 = vld [vmem:[%s165 + $0x10c] sm:$0xf]
      %v703 = vld [vmem:[%s165 + $0x110] sm:$0xf]
      %v704 = vld [vmem:[%s165 + $0x114] sm:$0xf]
      %v705 = vld [vmem:[%s165 + $0x118] sm:$0xf]
      %v706 = vld [vmem:[%s165 + $0x11c] sm:$0xf]
      %v767 = vunpack.c.l.b16 %v647
      %v768 = vunpack.c.l.b16 %v648
      %v769 = vunpack.c.l.b16 %v649
      %v770 = vunpack.c.l.b16 %v650
      %v771 = vunpack.c.l.b16 %v651
      %v772 = vunpack.c.l.b16 %v652
      %v773 = vunpack.c.l.b16 %v653
      %v774 = vunpack.c.l.b16 %v654
      %v775 = vunpack.c.l.b16 %v655
      %v776 = vunpack.c.l.b16 %v656
      %v777 = vunpack.c.l.b16 %v657
      %v778 = vunpack.c.l.b16 %v658
      %v779 = vunpack.c.l.b16 %v659
      %v780 = vunpack.c.l.b16 %v660
      %v781 = vunpack.c.l.b16 %v661
      %v782 = vunpack.c.l.b16 %v662
      %v783 = vunpack.c.l.b16 %v663
      %v784 = vunpack.c.l.b16 %v664
      %v785 = vunpack.c.l.b16 %v665
      %v786 = vunpack.c.l.b16 %v666
      %v787 = vunpack.c.l.b16 %v667
      %v788 = vunpack.c.l.b16 %v668
      %v789 = vunpack.c.l.b16 %v669
      %v790 = vunpack.c.l.b16 %v670
      %v791 = vunpack.c.l.b16 %v671
      %v792 = vunpack.c.l.b16 %v672
      %v793 = vunpack.c.l.b16 %v673
      %v794 = vunpack.c.l.b16 %v674
      %v795 = vunpack.c.l.b16 %v675
      %v796 = vunpack.c.l.b16 %v676
      %v797 = vunpack.c.l.b16 %v677
      %v798 = vunpack.c.l.b16 %v678
      %v799 = vunpack.c.l.b16 %v679
      %v800 = vunpack.c.l.b16 %v680
      %v801 = vunpack.c.l.b16 %v681
      %v802 = vunpack.c.l.b16 %v682
      %v803 = vunpack.c.l.b16 %v683
      %v804 = vunpack.c.l.b16 %v684
      %v805 = vunpack.c.l.b16 %v685
      %v806 = vunpack.c.l.b16 %v686
      %v807 = vunpack.c.l.b16 %v687
      %v808 = vunpack.c.l.b16 %v688
      %v809 = vunpack.c.l.b16 %v689
      %v810 = vunpack.c.l.b16 %v690
      %v811 = vunpack.c.l.b16 %v691
      %v812 = vunpack.c.l.b16 %v692
      %v813 = vunpack.c.l.b16 %v693
      %v814 = vunpack.c.l.b16 %v694
      %v815 = vunpack.c.l.b16 %v695
      %v816 = vunpack.c.l.b16 %v696
      %v817 = vunpack.c.l.b16 %v697
      %v818 = vunpack.c.l.b16 %v698
      %v819 = vunpack.c.l.b16 %v699
      %v820 = vunpack.c.l.b16 %v700
      %v821 = vunpack.c.l.b16 %v701
      %v822 = vunpack.c.l.b16 %v702
      %v823 = vunpack.c.l.b16 %v703
      %v824 = vunpack.c.l.b16 %v704
      %v825 = vunpack.c.l.b16 %v705
      %v826 = vunpack.c.l.b16 %v706
      %v827 = vpack.c.b16 %v768, %v767
      %v828 = vpack.c.b16 %v770, %v769
      %v829 = vpack.c.b16 %v772, %v771
      %v830 = vpack.c.b16 %v774, %v773
      %v831 = vpack.c.b16 %v776, %v775
      %v832 = vpack.c.b16 %v778, %v777
      %v833 = vpack.c.b16 %v780, %v779
      %v834 = vpack.c.b16 %v782, %v781
      %v835 = vpack.c.b16 %v784, %v783
      %v836 = vpack.c.b16 %v786, %v785
      %v837 = vpack.c.b16 %v788, %v787
      %v838 = vpack.c.b16 %v790, %v789
      %v839 = vpack.c.b16 %v792, %v791
      %v840 = vpack.c.b16 %v794, %v793
      %v841 = vpack.c.b16 %v796, %v795
      %v842 = vpack.c.b16 %v798, %v797
      %v843 = vpack.c.b16 %v800, %v799
      %v844 = vpack.c.b16 %v802, %v801
      %v845 = vpack.c.b16 %v804, %v803
      %v846 = vpack.c.b16 %v806, %v805
      %v847 = vpack.c.b16 %v808, %v807
      %v848 = vpack.c.b16 %v810, %v809
      %v849 = vpack.c.b16 %v812, %v811
      %v850 = vpack.c.b16 %v814, %v813
      %v851 = vpack.c.b16 %v816, %v815
      %v852 = vpack.c.b16 %v818, %v817
      %v853 = vpack.c.b16 %v820, %v819
      %v854 = vpack.c.b16 %v822, %v821
      %v855 = vpack.c.b16 %v824, %v823
      %v856 = vpack.c.b16 %v826, %v825
      %887 = vmatprep.subr.bf16.mxu0 0
      %888 = vmatpush1.bf16.msra.mxu0 %v827
      %889 = vmatprep.subr.bf16.mxu0 0
      %890 = vmatpush1.bf16.msra.mxu0 %v828
      %891 = vmatprep.subr.bf16.mxu0 0
      %892 = vmatpush1.bf16.msra.mxu0 %v829
      %893 = vmatprep.subr.bf16.mxu0 0
      %894 = vmatpush1.bf16.msra.mxu0 %v830
      %895 = vmatprep.subr.bf16.mxu0 0
      %896 = vmatpush1.bf16.msra.mxu0 %v831
      %897 = vmatprep.subr.bf16.mxu0 0
      %898 = vmatpush1.bf16.msra.mxu0 %v832
      %899 = vmatprep.subr.bf16.mxu0 0
      %900 = vmatpush1.bf16.msra.mxu0 %v833
      %901 = vmatprep.subr.bf16.mxu0 0
      %902 = vmatpush1.bf16.msra.mxu0 %v834
      %903 = vmatprep.subr.bf16.mxu0 0
      %904 = vmatpush1.bf16.msra.mxu0 %v835
      %905 = vmatprep.subr.bf16.mxu0 0
      %906 = vmatpush1.bf16.msra.mxu0 %v836
      %907 = vmatprep.subr.bf16.mxu0 0
      %908 = vmatpush1.bf16.msra.mxu0 %v837
      %909 = vmatprep.subr.bf16.mxu0 0
      %910 = vmatpush1.bf16.msra.mxu0 %v838
      %911 = vmatprep.subr.bf16.mxu0 0
      %912 = vmatpush1.bf16.msra.mxu0 %v839
      %913 = vmatprep.subr.bf16.mxu0 0
      %914 = vmatpush1.bf16.msra.mxu0 %v840
      %915 = vmatprep.subr.bf16.mxu0 0
      %916 = vmatpush1.bf16.msra.mxu0 %v841
      %917 = vmatprep.subr.bf16.mxu0 0
      %918 = vmatpush1.bf16.msra.mxu0 %v842
      %919 = vmatprep.mubr.bf16.mxu0 %v297
      %920 = vmatmul.mubr.bf16.gmra.mrb[0].mxu0 %v296
      %v921 = vpop.f32.mrb[0].mxu0
      %v922 = vadd.f32 0.0, %v921
      %v923 = vpop.f32.mrb[0].mxu0
      %v924 = vpop.f32.mrb[0].mxu0
      %v925 = vadd.f32 0.0, %v924
      %v926 = vpop.f32.mrb[0].mxu0
      %927 = vmatprep.mubr.bf16.mxu0 %v301
      %928 = vmatmul.mubr.bf16.gmra.mrb[0].mxu0 %v300
      %v929 = vpop.f32.mrb[0].mxu0
      %v930 = vadd.f32 0.0, %v929
      %v931 = vpop.f32.mrb[0].mxu0
      %v932 = vpop.f32.mrb[0].mxu0
      %v933 = vadd.f32 0.0, %v932
      %v934 = vpop.f32.mrb[0].mxu0
      %935 = vmatprep.mubr.bf16.mxu0 %v305
      %936 = vmatmul.mubr.bf16.gmra.mrb[0].mxu0 %v304
      %v937 = vpop.f32.mrb[0].mxu0
      %v938 = vadd.f32 0.0, %v937
      %v939 = vpop.f32.mrb[0].mxu0
      %v940 = vpop.f32.mrb[0].mxu0
      %v941 = vadd.f32 0.0, %v940
      %v942 = vpop.f32.mrb[0].mxu0
      %943 = vmatprep.mubr.bf16.mxu0 %v309
      %944 = vmatmul.mubr.bf16.gmra.mrb[0].mxu0 %v308
      %v945 = vpop.f32.mrb[0].mxu0
      %v946 = vadd.f32 0.0, %v945
      %v947 = vpop.f32.mrb[0].mxu0
      %v948 = vpop.f32.mrb[0].mxu0
      %v949 = vadd.f32 0.0, %v948
      %v950 = vpop.f32.mrb[0].mxu0
      %951 = vdwg.mxu0
      %952 = vmatprep.subr.bf16.mxu0 0
      %953 = vmatpush1.bf16.msra.mxu0 %v843
      %954 = vmatprep.subr.bf16.mxu0 0
      %955 = vmatpush1.bf16.msra.mxu0 %v844
      %956 = vmatprep.subr.bf16.mxu0 0
      %957 = vmatpush1.bf16.msra.mxu0 %v845
      %958 = vmatprep.subr.bf16.mxu0 0
      %959 = vmatpush1.bf16.msra.mxu0 %v846
      %960 = vmatprep.subr.bf16.mxu0 0
      %961 = vmatpush1.bf16.msra.mxu0 %v847
      %962 = vmatprep.subr.bf16.mxu0 0
      %963 = vmatpush1.bf16.msra.mxu0 %v848
      %964 = vmatprep.subr.bf16.mxu0 0
      %965 = vmatpush1.bf16.msra.mxu0 %v849
      %966 = vmatprep.subr.bf16.mxu0 0
      %967 = vmatpush1.bf16.msra.mxu0 %v850
      %968 = vmatprep.subr.bf16.mxu0 0
      %969 = vmatpush1.bf16.msra.mxu0 %v851
      %970 = vmatprep.subr.bf16.mxu0 0
      %971 = vmatpush1.bf16.msra.mxu0 %v852
      %972 = vmatprep.subr.bf16.mxu0 0
      %973 = vmatpush1.bf16.msra.mxu0 %v853
      %974 = vmatprep.subr.bf16.mxu0 0
      %975 = vmatpush1.bf16.msra.mxu0 %v854
      %976 = vmatprep.subr.bf16.mxu0 0
      %977 = vmatpush1.bf16.msra.mxu0 %v855
      %978 = vmatprep.subr.bf16.mxu0 0
      %979 = vmatpush1.bf16.msra.mxu0 %v856
      %980 = vmatprep.subr.bf16.mxu0 0
      %981 = vmatpush1.bf16.msra.mxu0 0
      %982 = vmatprep.subr.bf16.mxu0 0
      %983 = vmatpush1.bf16.msra.mxu0 0
      %984 = vmatprep.mubr.bf16.mxu0 %v506
      %985 = vmatmul.mubr.bf16.gmra.mrb[0].mxu0 %v298
      %v986 = vpop.f32.mrb[0].mxu0
      %v987 = vadd.f32 %v922, %v986
      %v988 = vpop.f32.mrb[0].mxu0
      %v989 = vpop.f32.mrb[0].mxu0
      %v990 = vadd.f32 %v925, %v989
      %v991 = vpop.f32.mrb[0].mxu0
      %992 = vmatprep.mubr.bf16.mxu0 %v509
      %993 = vmatmul.mubr.bf16.gmra.mrb[0].mxu0 %v302
      %v994 = vpop.f32.mrb[0].mxu0
      %v995 = vadd.f32 %v930, %v994
      %v996 = vpop.f32.mrb[0].mxu0
      %v997 = vpop.f32.mrb[0].mxu0
      %v998 = vadd.f32 %v933, %v997
      %v999 = vpop.f32.mrb[0].mxu0
      %1000 = vmatprep.mubr.bf16.mxu0 %v512
      %1001 = vmatmul.mubr.bf16.gmra.mrb[0].mxu0 %v306
      %v1002 = vpop.f32.mrb[0].mxu0
      %v1003 = vadd.f32 %v938, %v1002
      %v1004 = vpop.f32.mrb[0].mxu0
      %v1005 = vpop.f32.mrb[0].mxu0
      %v1006 = vadd.f32 %v941, %v1005
      %v1007 = vpop.f32.mrb[0].mxu0
      %1008 = vmatprep.mubr.bf16.mxu0 %v515
      %1009 = vmatmul.mubr.bf16.gmra.mrb[0].mxu0 %v310
      %v1010 = vpop.f32.mrb[0].mxu0
      %v1011 = vadd.f32 %v946, %v1010
      %v1012 = vpop.f32.mrb[0].mxu0
      %v1013 = vpop.f32.mrb[0].mxu0
      %v1014 = vadd.f32 %v949, %v1013
      %v1015 = vpop.f32.mrb[0].mxu0
      %1016 = vdwg.mxu0
      %v1017 = vmax.f32 %v617, %v987
      %v1018 = vmax.f32 %v620, %v990
      %v1019 = vmax.f32 %v625, %v995
      %v1020 = vmax.f32 %v628, %v998
      %v1021 = vmax.f32 %v633, %v1003
      %v1022 = vmax.f32 %v636, %v1006
      %v1023 = vmax.f32 %v641, %v1011
      %v1024 = vmax.f32 %v644, %v1014
      %v1025 = vmax.f32 %v1017, %v1021
      %v1026 = vmax.f32 %v1018, %v1022
      %v1027 = vmax.f32 %v1019, %v1023
      %v1028 = vmax.f32 %v1020, %v1024
      %v1029 = vld [vmem:[%s2] sm:$0xff]
      %v1030 = vld [vmem:[%s2 + $0x8] sm:$0xff]
      %v1031 = vld [vmem:[%s2 + $0x10] sm:$0xff]
      %v1032 = vld [vmem:[%s2 + $0x18] sm:$0xff]
      %1034 = vset.pattern.permute.xlu0 0
      %1035 = vperm.xlu0 %1034, %v1029
      %v1036 = vpop.permute.xlu0 %1035
      %1039 = vset.pattern.permute.xlu0 0
      %1040 = vperm.xlu0 %1039, %v1030
      %v1041 = vpop.permute.xlu0 %1040
      %1044 = vset.pattern.permute.xlu0 0
      %1045 = vperm.xlu0 %1044, %v1031
      %v1046 = vpop.permute.xlu0 %1045
      %1049 = vset.pattern.permute.xlu0 0
      %1050 = vperm.xlu0 %1049, %v1032
      %v1051 = vpop.permute.xlu0 %1050
      %v1053 = vadd.f32 %v1025, %v1036
      %v1054 = vadd.f32 %v1026, %v1041
      %v1055 = vadd.f32 %v1027, %v1046
      %v1056 = vadd.f32 %v1028, %v1051
      %v1057 = vmax.f32 %v1053, 0.0
      %v1058 = vmax.f32 %v1054, 0.0
      %v1059 = vmax.f32 %v1055, 0.0
      %v1060 = vmax.f32 %v1056, 0.0
      %vm1061 = vcmask 400384
      %1062 = vst.msk [vmem:[%s170] sm:$0xff] %vm1061, %v1057
      %1063 = vst.msk [vmem:[%s170 + $0x8] sm:$0xff] %vm1061, %v1058
      %1064 = vst.msk [vmem:[%s170 + $0x10] sm:$0xff] %vm1061, %v1059
      %1065 = vst.msk [vmem:[%s170 + $0x18] sm:$0xff] %vm1061, %v1060
      %p1066 = scmp.lt.s32.totalorder %s14, 1
      %s1067 = scalar_select %p1066, %s14, 1
      %s1068 = smul.addr %s1067, 4
      %s1069 = smul.addr %s1068, 8
      %s1070 = scalar_lea.vmem %s3, %s1069
      // Predicated region
      $region33: #{cnn_forward.4} parent=31 // pred_check
        %p1071 = pneg %p100
      $region34: #{cnn_forward.4} parent=31 // pred_check_branch
        %1073 = sbr.rel (%p1071) target = $region36
      $region35: #{cnn_forward.4} parent=31 // pred_region
        _
      $region36: #{cnn_forward.4} parent=31 // pred_fallthru
        _
    $region32: #{cnn_forward.4} parent=5 // pred_fallthru
      _
    %p1074 = scmp.le.s32.totalorder 2, %s9
    // Predicated region
    $region37: #{cnn_forward.4} parent=5 // pred_check
      %p1075 = pneg %p1074
    $region38: #{cnn_forward.4} parent=5 // pred_check_branch
      %1077 = sbr.rel (%p1075) target = $region40
    $region39: #{cnn_forward.4} parent=5 // pred_region
      %s1078 = ssub.s32 %s9, 2
      // Predicated region
      $region41: #{cnn_forward.4} parent=39 // pred_check
        %p1079 = pneg %p106
      $region42: #{cnn_forward.4} parent=39 // pred_check_branch
        %1081 = sbr.rel (%p1079) target = $region44
      $region43: #{cnn_forward.4} parent=39 // pred_region
        %p1082 = scmp.lt.s32.totalorder %s15, 1
        %s1083 = scalar_select %p1082, %s15, 1
        %s1084 = smul.addr %s1083, 4
        %s1085 = smul.addr %s1084, 8
        %s1086 = scalar_lea.vmem %s3, %s1085
      $region44: #{cnn_forward.4} parent=39 // pred_fallthru
        _
    $region40: #{cnn_forward.4} parent=5 // pred_fallthru
      _
  $region6: #{cnn_forward.4} parent=0 // loop_footer
    %s13 = sadd.s32 1, %s9
  $region7: #{cnn_forward.4} parent=0 // loop_footer_branch
    %8 = sbr.rel target = $region3
  $region8: #{cnn_forward.4} parent=0 // loop_exit
    _

// kernel: cnn_forward.5
$region0: #{cnn_forward.5}
  #allocation0 [shape = 'u32[]', space=smem, size = 0x4, offset = 0x4, fixed_abs, tag = 'smem constant byte address 0x4 - core index']
  #allocation1 [shape = 'u32[144,128]{1,0:T(1,128)}', space=vmem, size = 0x12000, scoped, tag = 'internal scratch']
  %s0 = inlined_call_operand.vmem [shape: f32[8,1568], index: 0, kind: input, shape index: {}]
  %s1 = inlined_call_operand.vmem [shape: f32[1568,128], index: 1, kind: input, shape index: {}]
  %s2 = inlined_call_operand.vmem [shape: f32[1,128], index: 2, kind: input, shape index: {}]
  %s3 = inlined_call_operand.vmem [shape: f32[8,128], index: 3, kind: output, shape index: {}]
  %s4 = sld [smem:[#allocation0]]
  $region22: #{cnn_forward.5} parent=0
    _
  %s6 = ssub.s32 1, %s4
  %s7 = scalar_select 0, %s6, %s4
  // Predicated region
  $region2: #{cnn_forward.5} parent=0 // pred_check
    _
  $region3: #{cnn_forward.5} parent=0 // pred_check_branch
    %9 = sbr.rel (0) target = $region5
  $region4: #{cnn_forward.5} parent=0 // pred_region
    _
  $region5: #{cnn_forward.5} parent=0 // pred_fallthru
    _
  // Predicated region
  $region6: #{cnn_forward.5} parent=0 // pred_check
    _
  $region7: #{cnn_forward.5} parent=0 // pred_check_branch
    %11 = sbr.rel (0) target = $region9
  $region8: #{cnn_forward.5} parent=0 // pred_region
    _
  $region9: #{cnn_forward.5} parent=0 // pred_fallthru
    _
  // Predicated region
  $region10: #{cnn_forward.5} parent=0 // pred_check
    _
  $region11: #{cnn_forward.5} parent=0 // pred_check_branch
    %13 = sbr.rel (0) target = $region13
  $region12: #{cnn_forward.5} parent=0 // pred_region
    _
  $region13: #{cnn_forward.5} parent=0 // pred_fallthru
    _
  %v14 = vld [vmem:[%s0] sm:$0xff]
  %v15 = vld [vmem:[%s0 + $0x8] sm:$0xff]
  %v16 = vld [vmem:[%s0 + $0x10] sm:$0xff]
  %v17 = vld [vmem:[%s0 + $0x18] sm:$0xff]
  %v18 = vld [vmem:[%s0 + $0x20] sm:$0xff]
  %v19 = vld [vmem:[%s0 + $0x28] sm:$0xff]
  %v20 = vld [vmem:[%s0 + $0x30] sm:$0xff]
  %v21 = vld [vmem:[%s0 + $0x38] sm:$0xff]
  %v22 = vld [vmem:[%s0 + $0x40] sm:$0xff]
  %v23 = vld [vmem:[%s0 + $0x48] sm:$0xff]
  %v24 = vld [vmem:[%s0 + $0x50] sm:$0xff]
  %v25 = vld [vmem:[%s0 + $0x58] sm:$0xff]
  %v26 = vld [vmem:[%s0 + $0x60] sm:$0xff]
  %v27 = vld [vmem:[%s1] sm:$0xff]
  %v28 = vld [vmem:[%s1 + $0x8] sm:$0xff]
  %v29 = vld [vmem:[%s1 + $0x10] sm:$0xff]
  %v30 = vld [vmem:[%s1 + $0x18] sm:$0xff]
  %v31 = vld [vmem:[%s1 + $0x20] sm:$0xff]
  %v32 = vld [vmem:[%s1 + $0x28] sm:$0xff]
  %v33 = vld [vmem:[%s1 + $0x30] sm:$0xff]
  %v34 = vld [vmem:[%s1 + $0x38] sm:$0xff]
  %v35 = vld [vmem:[%s1 + $0x40] sm:$0xff]
  %v36 = vld [vmem:[%s1 + $0x48] sm:$0xff]
  %v37 = vld [vmem:[%s1 + $0x50] sm:$0xff]
  %v38 = vld [vmem:[%s1 + $0x58] sm:$0xff]
  %v39 = vld [vmem:[%s1 + $0x60] sm:$0xff]
  %v40 = vld [vmem:[%s1 + $0x68] sm:$0xff]
  %v41 = vld [vmem:[%s1 + $0x70] sm:$0xff]
  %v42 = vld [vmem:[%s1 + $0x78] sm:$0xff]
  %v43 = vld [vmem:[%s1 + $0x80] sm:$0xff]
  %v44 = vld [vmem:[%s1 + $0x88] sm:$0xff]
  %v45 = vld [vmem:[%s1 + $0x90] sm:$0xff]
  %v46 = vld [vmem:[%s1 + $0x98] sm:$0xff]
  %v47 = vld [vmem:[%s1 + $0xa0] sm:$0xff]
  %v48 = vld [vmem:[%s1 + $0xa8] sm:$0xff]
  %v49 = vld [vmem:[%s1 + $0xb0] sm:$0xff]
  %v50 = vld [vmem:[%s1 + $0xb8] sm:$0xff]
  %v51 = vld [vmem:[%s1 + $0xc0] sm:$0xff]
  %v52 = vld [vmem:[%s1 + $0xc8] sm:$0xff]
  %v53 = vld [vmem:[%s1 + $0xd0] sm:$0xff]
  %v54 = vld [vmem:[%s1 + $0xd8] sm:$0xff]
  %v55 = vld [vmem:[%s1 + $0xe0] sm:$0xff]
  %v56 = vld [vmem:[%s1 + $0xe8] sm:$0xff]
  %v57 = vld [vmem:[%s1 + $0xf0] sm:$0xff]
  %v58 = vld [vmem:[%s1 + $0xf8] sm:$0xff]
  %v59 = vld [vmem:[%s1 + $0x100] sm:$0xff]
  %v60 = vld [vmem:[%s1 + $0x108] sm:$0xff]
  %v61 = vld [vmem:[%s1 + $0x110] sm:$0xff]
  %v62 = vld [vmem:[%s1 + $0x118] sm:$0xff]
  %v63 = vld [vmem:[%s1 + $0x120] sm:$0xff]
  %v64 = vld [vmem:[%s1 + $0x128] sm:$0xff]
  %v65 = vld [vmem:[%s1 + $0x130] sm:$0xff]
  %v66 = vld [vmem:[%s1 + $0x138] sm:$0xff]
  %v67 = vld [vmem:[%s1 + $0x140] sm:$0xff]
  %v68 = vld [vmem:[%s1 + $0x148] sm:$0xff]
  %v69 = vld [vmem:[%s1 + $0x150] sm:$0xff]
  %v70 = vld [vmem:[%s1 + $0x158] sm:$0xff]
  %v71 = vld [vmem:[%s1 + $0x160] sm:$0xff]
  %v72 = vld [vmem:[%s1 + $0x168] sm:$0xff]
  %v73 = vld [vmem:[%s1 + $0x170] sm:$0xff]
  %v74 = vld [vmem:[%s1 + $0x178] sm:$0xff]
  %v75 = vld [vmem:[%s1 + $0x180] sm:$0xff]
  %v76 = vld [vmem:[%s1 + $0x188] sm:$0xff]
  %v77 = vld [vmem:[%s1 + $0x190] sm:$0xff]
  %v78 = vld [vmem:[%s1 + $0x198] sm:$0xff]
  %v79 = vld [vmem:[%s1 + $0x1a0] sm:$0xff]
  %v80 = vld [vmem:[%s1 + $0x1a8] sm:$0xff]
  %v81 = vld [vmem:[%s1 + $0x1b0] sm:$0xff]
  %v82 = vld [vmem:[%s1 + $0x1b8] sm:$0xff]
  %v83 = vld [vmem:[%s1 + $0x1c0] sm:$0xff]
  %v84 = vld [vmem:[%s1 + $0x1c8] sm:$0xff]
  %v85 = vld [vmem:[%s1 + $0x1d0] sm:$0xff]
  %v86 = vld [vmem:[%s1 + $0x1d8] sm:$0xff]
  %v87 = vld [vmem:[%s1 + $0x1e0] sm:$0xff]
  %v88 = vld [vmem:[%s1 + $0x1e8] sm:$0xff]
  %v89 = vld [vmem:[%s1 + $0x1f0] sm:$0xff]
  %v90 = vld [vmem:[%s1 + $0x1f8] sm:$0xff]
  %v91 = vld [vmem:[%s1 + $0x200] sm:$0xff]
  %v92 = vld [vmem:[%s1 + $0x208] sm:$0xff]
  %v93 = vld [vmem:[%s1 + $0x210] sm:$0xff]
  %v94 = vld [vmem:[%s1 + $0x218] sm:$0xff]
  %v95 = vld [vmem:[%s1 + $0x220] sm:$0xff]
  %v96 = vld [vmem:[%s1 + $0x228] sm:$0xff]
  %v97 = vld [vmem:[%s1 + $0x230] sm:$0xff]
  %v98 = vld [vmem:[%s1 + $0x238] sm:$0xff]
  %v99 = vld [vmem:[%s1 + $0x240] sm:$0xff]
  %v100 = vld [vmem:[%s1 + $0x248] sm:$0xff]
  %v101 = vld [vmem:[%s1 + $0x250] sm:$0xff]
  %v102 = vld [vmem:[%s1 + $0x258] sm:$0xff]
  %v103 = vld [vmem:[%s1 + $0x260] sm:$0xff]
  %v104 = vld [vmem:[%s1 + $0x268] sm:$0xff]
  %v105 = vld [vmem:[%s1 + $0x270] sm:$0xff]
  %v106 = vld [vmem:[%s1 + $0x278] sm:$0xff]
  %v107 = vld [vmem:[%s1 + $0x280] sm:$0xff]
  %v108 = vld [vmem:[%s1 + $0x288] sm:$0xff]
  %v109 = vld [vmem:[%s1 + $0x290] sm:$0xff]
  %v110 = vld [vmem:[%s1 + $0x298] sm:$0xff]
  %v111 = vld [vmem:[%s1 + $0x2a0] sm:$0xff]
  %v112 = vld [vmem:[%s1 + $0x2a8] sm:$0xff]
  %v113 = vld [vmem:[%s1 + $0x2b0] sm:$0xff]
  %v114 = vld [vmem:[%s1 + $0x2b8] sm:$0xff]
  %v115 = vld [vmem:[%s1 + $0x2c0] sm:$0xff]
  %v116 = vld [vmem:[%s1 + $0x2c8] sm:$0xff]
  %v117 = vld [vmem:[%s1 + $0x2d0] sm:$0xff]
  %v118 = vld [vmem:[%s1 + $0x2d8] sm:$0xff]
  %v119 = vld [vmem:[%s1 + $0x2e0] sm:$0xff]
  %v120 = vld [vmem:[%s1 + $0x2e8] sm:$0xff]
  %v121 = vld [vmem:[%s1 + $0x2f0] sm:$0xff]
  %v122 = vld [vmem:[%s1 + $0x2f8] sm:$0xff]
  %v123 = vld [vmem:[%s1 + $0x300] sm:$0xff]
  %v124 = vld [vmem:[%s1 + $0x308] sm:$0xff]
  %v125 = vld [vmem:[%s1 + $0x310] sm:$0xff]
  %v126 = vld [vmem:[%s1 + $0x318] sm:$0xff]
  %v127 = vld [vmem:[%s1 + $0x320] sm:$0xff]
  %v128 = vld [vmem:[%s1 + $0x328] sm:$0xff]
  %v129 = vld [vmem:[%s1 + $0x330] sm:$0xff]
  %v130 = vld [vmem:[%s1 + $0x338] sm:$0xff]
  %v131 = vld [vmem:[%s1 + $0x340] sm:$0xff]
  %v132 = vld [vmem:[%s1 + $0x348] sm:$0xff]
  %v133 = vld [vmem:[%s1 + $0x350] sm:$0xff]
  %v134 = vld [vmem:[%s1 + $0x358] sm:$0xff]
  %v135 = vld [vmem:[%s1 + $0x360] sm:$0xff]
  %v136 = vld [vmem:[%s1 + $0x368] sm:$0xff]
  %v137 = vld [vmem:[%s1 + $0x370] sm:$0xff]
  %v138 = vld [vmem:[%s1 + $0x378] sm:$0xff]
  %v139 = vld [vmem:[%s1 + $0x380] sm:$0xff]
  %v140 = vld [vmem:[%s1 + $0x388] sm:$0xff]
  %v141 = vld [vmem:[%s1 + $0x390] sm:$0xff]
  %v142 = vld [vmem:[%s1 + $0x398] sm:$0xff]
  %v143 = vld [vmem:[%s1 + $0x3a0] sm:$0xff]
  %v144 = vld [vmem:[%s1 + $0x3a8] sm:$0xff]
  %v145 = vld [vmem:[%s1 + $0x3b0] sm:$0xff]
  %v146 = vld [vmem:[%s1 + $0x3b8] sm:$0xff]
  %v147 = vld [vmem:[%s1 + $0x3c0] sm:$0xff]
  %v148 = vld [vmem:[%s1 + $0x3c8] sm:$0xff]
  %v149 = vld [vmem:[%s1 + $0x3d0] sm:$0xff]
  %v150 = vld [vmem:[%s1 + $0x3d8] sm:$0xff]
  %v151 = vld [vmem:[%s1 + $0x3e0] sm:$0xff]
  %v152 = vld [vmem:[%s1 + $0x3e8] sm:$0xff]
  %v153 = vld [vmem:[%s1 + $0x3f0] sm:$0xff]
  %v154 = vld [vmem:[%s1 + $0x3f8] sm:$0xff]
  %v155 = vld [vmem:[%s1 + $0x400] sm:$0xff]
  %v156 = vld [vmem:[%s1 + $0x408] sm:$0xff]
  %v157 = vld [vmem:[%s1 + $0x410] sm:$0xff]
  %v158 = vld [vmem:[%s1 + $0x418] sm:$0xff]
  %v159 = vld [vmem:[%s1 + $0x420] sm:$0xff]
  %v160 = vld [vmem:[%s1 + $0x428] sm:$0xff]
  %v161 = vld [vmem:[%s1 + $0x430] sm:$0xff]
  %v162 = vld [vmem:[%s1 + $0x438] sm:$0xff]
  %v163 = vld [vmem:[%s1 + $0x440] sm:$0xff]
  %v164 = vld [vmem:[%s1 + $0x448] sm:$0xff]
  %v165 = vld [vmem:[%s1 + $0x450] sm:$0xff]
  %v166 = vld [vmem:[%s1 + $0x458] sm:$0xff]
  %v167 = vld [vmem:[%s1 + $0x460] sm:$0xff]
  %v168 = vld [vmem:[%s1 + $0x468] sm:$0xff]
  %v169 = vld [vmem:[%s1 + $0x470] sm:$0xff]
  %v170 = vld [vmem:[%s1 + $0x478] sm:$0xff]
  %v171 = vld [vmem:[%s1 + $0x480] sm:$0xff]
  %v172 = vld [vmem:[%s1 + $0x488] sm:$0xff]
  %v173 = vld [vmem:[%s1 + $0x490] sm:$0xff]
  %v174 = vld [vmem:[%s1 + $0x498] sm:$0xff]
  %v175 = vld [vmem:[%s1 + $0x4a0] sm:$0xff]
  %v176 = vld [vmem:[%s1 + $0x4a8] sm:$0xff]
  %v177 = vld [vmem:[%s1 + $0x4b0] sm:$0xff]
  %v178 = vld [vmem:[%s1 + $0x4b8] sm:$0xff]
  %v179 = vld [vmem:[%s1 + $0x4c0] sm:$0xff]
  %v180 = vld [vmem:[%s1 + $0x4c8] sm:$0xff]
  %v181 = vld [vmem:[%s1 + $0x4d0] sm:$0xff]
  %v182 = vld [vmem:[%s1 + $0x4d8] sm:$0xff]
  %v183 = vld [vmem:[%s1 + $0x4e0] sm:$0xff]
  %v184 = vld [vmem:[%s1 + $0x4e8] sm:$0xff]
  %v185 = vld [vmem:[%s1 + $0x4f0] sm:$0xff]
  %v186 = vld [vmem:[%s1 + $0x4f8] sm:$0xff]
  %v187 = vld [vmem:[%s1 + $0x500] sm:$0xff]
  %v188 = vld [vmem:[%s1 + $0x508] sm:$0xff]
  %v189 = vld [vmem:[%s1 + $0x510] sm:$0xff]
  %v190 = vld [vmem:[%s1 + $0x518] sm:$0xff]
  %v191 = vld [vmem:[%s1 + $0x520] sm:$0xff]
  %v192 = vld [vmem:[%s1 + $0x528] sm:$0xff]
  %v193 = vld [vmem:[%s1 + $0x530] sm:$0xff]
  %v194 = vld [vmem:[%s1 + $0x538] sm:$0xff]
  %v195 = vld [vmem:[%s1 + $0x540] sm:$0xff]
  %v196 = vld [vmem:[%s1 + $0x548] sm:$0xff]
  %v197 = vld [vmem:[%s1 + $0x550] sm:$0xff]
  %v198 = vld [vmem:[%s1 + $0x558] sm:$0xff]
  %v199 = vld [vmem:[%s1 + $0x560] sm:$0xff]
  %v200 = vld [vmem:[%s1 + $0x568] sm:$0xff]
  %v201 = vld [vmem:[%s1 + $0x570] sm:$0xff]
  %v202 = vld [vmem:[%s1 + $0x578] sm:$0xff]
  %v203 = vld [vmem:[%s1 + $0x580] sm:$0xff]
  %v204 = vld [vmem:[%s1 + $0x588] sm:$0xff]
  %v205 = vld [vmem:[%s1 + $0x590] sm:$0xff]
  %v206 = vld [vmem:[%s1 + $0x598] sm:$0xff]
  %v207 = vld [vmem:[%s1 + $0x5a0] sm:$0xff]
  %v208 = vld [vmem:[%s1 + $0x5a8] sm:$0xff]
  %v209 = vld [vmem:[%s1 + $0x5b0] sm:$0xff]
  %v210 = vld [vmem:[%s1 + $0x5b8] sm:$0xff]
  %v211 = vld [vmem:[%s1 + $0x5c0] sm:$0xff]
  %v212 = vld [vmem:[%s1 + $0x5c8] sm:$0xff]
  %v213 = vld [vmem:[%s1 + $0x5d0] sm:$0xff]
  %v214 = vld [vmem:[%s1 + $0x5d8] sm:$0xff]
  %v215 = vld [vmem:[%s1 + $0x5e0] sm:$0xff]
  %v216 = vld [vmem:[%s1 + $0x5e8] sm:$0xff]
  %v217 = vld [vmem:[%s1 + $0x5f0] sm:$0xff]
  %v218 = vld [vmem:[%s1 + $0x5f8] sm:$0xff]
  %v219 = vld [vmem:[%s1 + $0x600] sm:$0xff]
  %v220 = vld [vmem:[%s1 + $0x608] sm:$0xff]
  %v221 = vld [vmem:[%s1 + $0x610] sm:$0xff]
  %v222 = vld [vmem:[%s1 + $0x618] sm:$0xff]
  %v223 = vld [vmem:[%s2] sm:$0x1]
  %v225 = vlaneseq
  %v226 = vshrl.u32 %v225, 7
  %v227 = vsub.s32 0, %v226
  %v228 = vrot.slane %v223, %v227
  %vm230 = vcmask 261120
  %v232 = vsel %vm230, %v26, 0
  %234 = vmatprep.subr.mxu0 0.0
  %235 = vmatpush1.msra.mxu0 %v27
  %236 = vmatprep.subr.mxu0 0.0
  %237 = vmatpush1.msra.mxu0 %v28
  %238 = vmatprep.subr.mxu0 0.0
  %239 = vmatpush1.msra.mxu0 %v29
  %240 = vmatprep.subr.mxu0 0.0
  %241 = vmatpush1.msra.mxu0 %v30
  %242 = vmatprep.subr.mxu0 0.0
  %243 = vmatpush1.msra.mxu0 %v31
  %244 = vmatprep.subr.mxu0 0.0
  %245 = vmatpush1.msra.mxu0 %v32
  %246 = vmatprep.subr.mxu0 0.0
  %247 = vmatpush1.msra.mxu0 %v33
  %248 = vmatprep.subr.mxu0 0.0
  %249 = vmatpush1.msra.mxu0 %v34
  %250 = vmatprep.subr.mxu0 0.0
  %251 = vmatpush1.msra.mxu0 %v35
  %252 = vmatprep.subr.mxu0 0.0
  %253 = vmatpush1.msra.mxu0 %v36
  %254 = vmatprep.subr.mxu0 0.0
  %255 = vmatpush1.msra.mxu0 %v37
  %256 = vmatprep.subr.mxu0 0.0
  %257 = vmatpush1.msra.mxu0 %v38
  %258 = vmatprep.subr.mxu0 0.0
  %259 = vmatpush1.msra.mxu0 %v39
  %260 = vmatprep.subr.mxu0 0.0
  %261 = vmatpush1.msra.mxu0 %v40
  %262 = vmatprep.subr.mxu0 0.0
  %263 = vmatpush1.msra.mxu0 %v41
  %264 = vmatprep.subr.mxu0 0.0
  %265 = vmatpush1.msra.mxu0 %v42
  %266 = vmatprep.subr.mxu0 0.0
  %267 = vmatpush1.msra.mxu0 %v43
  %268 = vmatprep.subr.mxu0 0.0
  %269 = vmatpush1.msra.mxu0 %v44
  %270 = vmatprep.subr.mxu0 0.0
  %271 = vmatpush1.msra.mxu0 %v45
  %272 = vmatprep.subr.mxu0 0.0
  %273 = vmatpush1.msra.mxu0 %v46
  %274 = vmatprep.subr.mxu0 0.0
  %275 = vmatpush1.msra.mxu0 %v47
  %276 = vmatprep.subr.mxu0 0.0
  %277 = vmatpush1.msra.mxu0 %v48
  %278 = vmatprep.subr.mxu0 0.0
  %279 = vmatpush1.msra.mxu0 %v49
  %280 = vmatprep.subr.mxu0 0.0
  %281 = vmatpush1.msra.mxu0 %v50
  %282 = vmatprep.subr.mxu0 0.0
  %283 = vmatpush1.msra.mxu0 %v51
  %284 = vmatprep.subr.mxu0 0.0
  %285 = vmatpush1.msra.mxu0 %v52
  %286 = vmatprep.subr.mxu0 0.0
  %287 = vmatpush1.msra.mxu0 %v53
  %288 = vmatprep.subr.mxu0 0.0
  %289 = vmatpush1.msra.mxu0 %v54
  %290 = vmatprep.subr.mxu0 0.0
  %291 = vmatpush1.msra.mxu0 %v55
  %292 = vmatprep.subr.mxu0 0.0
  %293 = vmatpush1.msra.mxu0 %v56
  %294 = vmatprep.subr.mxu0 0.0
  %295 = vmatpush1.msra.mxu0 %v57
  %296 = vmatprep.subr.mxu0 0.0
  %297 = vmatpush1.msra.mxu0 %v58
  %298 = vmatprep.mubr.f32.mxu0 %v15
  %299 = vmatmul.mubr.f32.gmra.mrb[0].mxu0 %v14
  %v300 = vpop.f32.mrb[0].mxu0
  %v301 = vadd.f32 %v228, %v300
  %v302 = vpop.f32.mrb[0].mxu0
  %303 = vdwg.mxu0
  %304 = vmatprep.subr.mxu0 0.0
  %305 = vmatpush1.msra.mxu0 %v59
  %306 = vmatprep.subr.mxu0 0.0
  %307 = vmatpush1.msra.mxu0 %v60
  %308 = vmatprep.subr.mxu0 0.0
  %309 = vmatpush1.msra.mxu0 %v61
  %310 = vmatprep.subr.mxu0 0.0
  %311 = vmatpush1.msra.mxu0 %v62
  %312 = vmatprep.subr.mxu0 0.0
  %313 = vmatpush1.msra.mxu0 %v63
  %314 = vmatprep.subr.mxu0 0.0
  %315 = vmatpush1.msra.mxu0 %v64
  %316 = vmatprep.subr.mxu0 0.0
  %317 = vmatpush1.msra.mxu0 %v65
  %318 = vmatprep.subr.mxu0 0.0
  %319 = vmatpush1.msra.mxu0 %v66
  %320 = vmatprep.subr.mxu0 0.0
  %321 = vmatpush1.msra.mxu0 %v67
  %322 = vmatprep.subr.mxu0 0.0
  %323 = vmatpush1.msra.mxu0 %v68
  %324 = vmatprep.subr.mxu0 0.0
  %325 = vmatpush1.msra.mxu0 %v69
  %326 = vmatprep.subr.mxu0 0.0
  %327 = vmatpush1.msra.mxu0 %v70
  %328 = vmatprep.subr.mxu0 0.0
  %329 = vmatpush1.msra.mxu0 %v71
  %330 = vmatprep.subr.mxu0 0.0
  %331 = vmatpush1.msra.mxu0 %v72
  %332 = vmatprep.subr.mxu0 0.0
  %333 = vmatpush1.msra.mxu0 %v73
  %334 = vmatprep.subr.mxu0 0.0
  %335 = vmatpush1.msra.mxu0 %v74
  %336 = vmatprep.subr.mxu0 0.0
  %337 = vmatpush1.msra.mxu0 %v75
  %338 = vmatprep.subr.mxu0 0.0
  %339 = vmatpush1.msra.mxu0 %v76
  %340 = vmatprep.subr.mxu0 0.0
  %341 = vmatpush1.msra.mxu0 %v77
  %342 = vmatprep.subr.mxu0 0.0
  %343 = vmatpush1.msra.mxu0 %v78
  %344 = vmatprep.subr.mxu0 0.0
  %345 = vmatpush1.msra.mxu0 %v79
  %346 = vmatprep.subr.mxu0 0.0
  %347 = vmatpush1.msra.mxu0 %v80
  %348 = vmatprep.subr.mxu0 0.0
  %349 = vmatpush1.msra.mxu0 %v81
  %350 = vmatprep.subr.mxu0 0.0
  %351 = vmatpush1.msra.mxu0 %v82
  %352 = vmatprep.subr.mxu0 0.0
  %353 = vmatpush1.msra.mxu0 %v83
  %354 = vmatprep.subr.mxu0 0.0
  %355 = vmatpush1.msra.mxu0 %v84
  %356 = vmatprep.subr.mxu0 0.0
  %357 = vmatpush1.msra.mxu0 %v85
  %358 = vmatprep.subr.mxu0 0.0
  %359 = vmatpush1.msra.mxu0 %v86
  %360 = vmatprep.subr.mxu0 0.0
  %361 = vmatpush1.msra.mxu0 %v87
  %362 = vmatprep.subr.mxu0 0.0
  %363 = vmatpush1.msra.mxu0 %v88
  %364 = vmatprep.subr.mxu0 0.0
  %365 = vmatpush1.msra.mxu0 %v89
  %366 = vmatprep.subr.mxu0 0.0
  %367 = vmatpush1.msra.mxu0 %v90
  %368 = vmatprep.mubr.f32.mxu0 %v17
  %369 = vmatmul.mubr.f32.gmra.mrb[0].mxu0 %v16
  %v370 = vpop.f32.mrb[0].mxu0
  %v371 = vadd.f32 %v301, %v370
  %v372 = vpop.f32.mrb[0].mxu0
  %373 = vdwg.mxu0
  %374 = vmatprep.subr.mxu0 0.0
  %375 = vmatpush1.msra.mxu0 %v91
  %376 = vmatprep.subr.mxu0 0.0
  %377 = vmatpush1.msra.mxu0 %v92
  %378 = vmatprep.subr.mxu0 0.0
  %379 = vmatpush1.msra.mxu0 %v93
  %380 = vmatprep.subr.mxu0 0.0
  %381 = vmatpush1.msra.mxu0 %v94
  %382 = vmatprep.subr.mxu0 0.0
  %383 = vmatpush1.msra.mxu0 %v95
  %384 = vmatprep.subr.mxu0 0.0
  %385 = vmatpush1.msra.mxu0 %v96
  %386 = vmatprep.subr.mxu0 0.0
  %387 = vmatpush1.msra.mxu0 %v97
  %388 = vmatprep.subr.mxu0 0.0
  %389 = vmatpush1.msra.mxu0 %v98
  %390 = vmatprep.subr.mxu0 0.0
  %391 = vmatpush1.msra.mxu0 %v99
  %392 = vmatprep.subr.mxu0 0.0
  %393 = vmatpush1.msra.mxu0 %v100
  %394 = vmatprep.subr.mxu0 0.0
  %395 = vmatpush1.msra.mxu0 %v101
  %396 = vmatprep.subr.mxu0 0.0
  %397 = vmatpush1.msra.mxu0 %v102
  %398 = vmatprep.subr.mxu0 0.0
  %399 = vmatpush1.msra.mxu0 %v103
  %400 = vmatprep.subr.mxu0 0.0
  %401 = vmatpush1.msra.mxu0 %v104
  %402 = vmatprep.subr.mxu0 0.0
  %403 = vmatpush1.msra.mxu0 %v105
  %404 = vmatprep.subr.mxu0 0.0
  %405 = vmatpush1.msra.mxu0 %v106
  %406 = vmatprep.subr.mxu0 0.0
  %407 = vmatpush1.msra.mxu0 %v107
  %408 = vmatprep.subr.mxu0 0.0
  %409 = vmatpush1.msra.mxu0 %v108
  %410 = vmatprep.subr.mxu0 0.0
  %411 = vmatpush1.msra.mxu0 %v109
  %412 = vmatprep.subr.mxu0 0.0
  %413 = vmatpush1.msra.mxu0 %v110
  %414 = vmatprep.subr.mxu0 0.0
  %415 = vmatpush1.msra.mxu0 %v111
  %416 = vmatprep.subr.mxu0 0.0
  %417 = vmatpush1.msra.mxu0 %v112
  %418 = vmatprep.subr.mxu0 0.0
  %419 = vmatpush1.msra.mxu0 %v113
  %420 = vmatprep.subr.mxu0 0.0
  %421 = vmatpush1.msra.mxu0 %v114
  %422 = vmatprep.subr.mxu0 0.0
  %423 = vmatpush1.msra.mxu0 %v115
  %424 = vmatprep.subr.mxu0 0.0
  %425 = vmatpush1.msra.mxu0 %v116
  %426 = vmatprep.subr.mxu0 0.0
  %427 = vmatpush1.msra.mxu0 %v117
  %428 = vmatprep.subr.mxu0 0.0
  %429 = vmatpush1.msra.mxu0 %v118
  %430 = vmatprep.subr.mxu0 0.0
  %431 = vmatpush1.msra.mxu0 %v119
  %432 = vmatprep.subr.mxu0 0.0
  %433 = vmatpush1.msra.mxu0 %v120
  %434 = vmatprep.subr.mxu0 0.0
  %435 = vmatpush1.msra.mxu0 %v121
  %436 = vmatprep.subr.mxu0 0.0
  %437 = vmatpush1.msra.mxu0 %v122
  %438 = vmatprep.mubr.f32.mxu0 %v19
  %439 = vmatmul.mubr.f32.gmra.mrb[0].mxu0 %v18
  %v440 = vpop.f32.mrb[0].mxu0
  %v441 = vadd.f32 %v371, %v440
  %v442 = vpop.f32.mrb[0].mxu0
  %443 = vdwg.mxu0
  %444 = vmatprep.subr.mxu0 0.0
  %445 = vmatpush1.msra.mxu0 %v123
  %446 = vmatprep.subr.mxu0 0.0
  %447 = vmatpush1.msra.mxu0 %v124
  %448 = vmatprep.subr.mxu0 0.0
  %449 = vmatpush1.msra.mxu0 %v125
  %450 = vmatprep.subr.mxu0 0.0
  %451 = vmatpush1.msra.mxu0 %v126
  %452 = vmatprep.subr.mxu0 0.0
  %453 = vmatpush1.msra.mxu0 %v127
  %454 = vmatprep.subr.mxu0 0.0
  %455 = vmatpush1.msra.mxu0 %v128
  %456 = vmatprep.subr.mxu0 0.0
  %457 = vmatpush1.msra.mxu0 %v129
  %458 = vmatprep.subr.mxu0 0.0
  %459 = vmatpush1.msra.mxu0 %v130
  %460 = vmatprep.subr.mxu0 0.0
  %461 = vmatpush1.msra.mxu0 %v131
  %462 = vmatprep.subr.mxu0 0.0
  %463 = vmatpush1.msra.mxu0 %v132
  %464 = vmatprep.subr.mxu0 0.0
  %465 = vmatpush1.msra.mxu0 %v133
  %466 = vmatprep.subr.mxu0 0.0
  %467 = vmatpush1.msra.mxu0 %v134
  %468 = vmatprep.subr.mxu0 0.0
  %469 = vmatpush1.msra.mxu0 %v135
  %470 = vmatprep.subr.mxu0 0.0
  %471 = vmatpush1.msra.mxu0 %v136
  %472 = vmatprep.subr.mxu0 0.0
  %473 = vmatpush1.msra.mxu0 %v137
  %474 = vmatprep.subr.mxu0 0.0
  %475 = vmatpush1.msra.mxu0 %v138
  %476 = vmatprep.subr.mxu0 0.0
  %477 = vmatpush1.msra.mxu0 %v139
  %478 = vmatprep.subr.mxu0 0.0
  %479 = vmatpush1.msra.mxu0 %v140
  %480 = vmatprep.subr.mxu0 0.0
  %481 = vmatpush1.msra.mxu0 %v141
  %482 = vmatprep.subr.mxu0 0.0
  %483 = vmatpush1.msra.mxu0 %v142
  %484 = vmatprep.subr.mxu0 0.0
  %485 = vmatpush1.msra.mxu0 %v143
  %486 = vmatprep.subr.mxu0 0.0
  %487 = vmatpush1.msra.mxu0 %v144
  %488 = vmatprep.subr.mxu0 0.0
  %489 = vmatpush1.msra.mxu0 %v145
  %490 = vmatprep.subr.mxu0 0.0
  %491 = vmatpush1.msra.mxu0 %v146
  %492 = vmatprep.subr.mxu0 0.0
  %493 = vmatpush1.msra.mxu0 %v147
  %494 = vmatprep.subr.mxu0 0.0
  %495 = vmatpush1.msra.mxu0 %v148
  %496 = vmatprep.subr.mxu0 0.0
  %497 = vmatpush1.msra.mxu0 %v149
  %498 = vmatprep.subr.mxu0 0.0
  %499 = vmatpush1.msra.mxu0 %v150
  %500 = vmatprep.subr.mxu0 0.0
  %501 = vmatpush1.msra.mxu0 %v151
  %502 = vmatprep.subr.mxu0 0.0
  %503 = vmatpush1.msra.mxu0 %v152
  %504 = vmatprep.subr.mxu0 0.0
  %505 = vmatpush1.msra.mxu0 %v153
  %506 = vmatprep.subr.mxu0 0.0
  %507 = vmatpush1.msra.mxu0 %v154
  %508 = vmatprep.mubr.f32.mxu0 %v21
  %509 = vmatmul.mubr.f32.gmra.mrb[0].mxu0 %v20
  %v510 = vpop.f32.mrb[0].mxu0
  %v511 = vadd.f32 %v441, %v510
  %v512 = vpop.f32.mrb[0].mxu0
  %513 = vdwg.mxu0
  %514 = vmatprep.subr.mxu0 0.0
  %515 = vmatpush1.msra.mxu0 %v155
  %516 = vmatprep.subr.mxu0 0.0
  %517 = vmatpush1.msra.mxu0 %v156
  %518 = vmatprep.subr.mxu0 0.0
  %519 = vmatpush1.msra.mxu0 %v157
  %520 = vmatprep.subr.mxu0 0.0
  %521 = vmatpush1.msra.mxu0 %v158
  %522 = vmatprep.subr.mxu0 0.0
  %523 = vmatpush1.msra.mxu0 %v159
  %524 = vmatprep.subr.mxu0 0.0
  %525 = vmatpush1.msra.mxu0 %v160
  %526 = vmatprep.subr.mxu0 0.0
  %527 = vmatpush1.msra.mxu0 %v161
  %528 = vmatprep.subr.mxu0 0.0
  %529 = vmatpush1.msra.mxu0 %v162
  %530 = vmatprep.subr.mxu0 0.0
  %531 = vmatpush1.msra.mxu0 %v163
  %532 = vmatprep.subr.mxu0 0.0
  %533 = vmatpush1.msra.mxu0 %v164
  %534 = vmatprep.subr.mxu0 0.0
  %535 = vmatpush1.msra.mxu0 %v165
  %536 = vmatprep.subr.mxu0 0.0
  %537 = vmatpush1.msra.mxu0 %v166
  %538 = vmatprep.subr.mxu0 0.0
  %539 = vmatpush1.msra.mxu0 %v167
  %540 = vmatprep.subr.mxu0 0.0
  %541 = vmatpush1.msra.mxu0 %v168
  %542 = vmatprep.subr.mxu0 0.0
  %543 = vmatpush1.msra.mxu0 %v169
  %544 = vmatprep.subr.mxu0 0.0
  %545 = vmatpush1.msra.mxu0 %v170
  %546 = vmatprep.subr.mxu0 0.0
  %547 = vmatpush1.msra.mxu0 %v171
  %548 = vmatprep.subr.mxu0 0.0
  %549 = vmatpush1.msra.mxu0 %v172
  %550 = vmatprep.subr.mxu0 0.0
  %551 = vmatpush1.msra.mxu0 %v173
  %552 = vmatprep.subr.mxu0 0.0
  %553 = vmatpush1.msra.mxu0 %v174
  %554 = vmatprep.subr.mxu0 0.0
  %555 = vmatpush1.msra.mxu0 %v175
  %556 = vmatprep.subr.mxu0 0.0
  %557 = vmatpush1.msra.mxu0 %v176
  %558 = vmatprep.subr.mxu0 0.0
  %559 = vmatpush1.msra.mxu0 %v177
  %560 = vmatprep.subr.mxu0 0.0
  %561 = vmatpush1.msra.mxu0 %v178
  %562 = vmatprep.subr.mxu0 0.0
  %563 = vmatpush1.msra.mxu0 %v179
  %564 = vmatprep.subr.mxu0 0.0
  %565 = vmatpush1.msra.mxu0 %v180
  %566 = vmatprep.subr.mxu0 0.0
  %567 = vmatpush1.msra.mxu0 %v181
  %568 = vmatprep.subr.mxu0 0.0
  %569 = vmatpush1.msra.mxu0 %v182
  %570 = vmatprep.subr.mxu0 0.0
  %571 = vmatpush1.msra.mxu0 %v183
  %572 = vmatprep.subr.mxu0 0.0
  %573 = vmatpush1.msra.mxu0 %v184
  %574 = vmatprep.subr.mxu0 0.0
  %575 = vmatpush1.msra.mxu0 %v185
  %576 = vmatprep.subr.mxu0 0.0
  %577 = vmatpush1.msra.mxu0 %v186
  %578 = vmatprep.mubr.f32.mxu0 %v23
  %579 = vmatmul.mubr.f32.gmra.mrb[0].mxu0 %v22
  %v580 = vpop.f32.mrb[0].mxu0
  %v581 = vadd.f32 %v511, %v580
  %v582 = vpop.f32.mrb[0].mxu0
  %583 = vdwg.mxu0
  %584 = vmatprep.subr.mxu0 0.0
  %585 = vmatpush1.msra.mxu0 %v187
  %586 = vmatprep.subr.mxu0 0.0
  %587 = vmatpush1.msra.mxu0 %v188
  %588 = vmatprep.subr.mxu0 0.0
  %589 = vmatpush1.msra.mxu0 %v189
  %590 = vmatprep.subr.mxu0 0.0
  %591 = vmatpush1.msra.mxu0 %v190
  %592 = vmatprep.subr.mxu0 0.0
  %593 = vmatpush1.msra.mxu0 %v191
  %594 = vmatprep.subr.mxu0 0.0
  %595 = vmatpush1.msra.mxu0 %v192
  %596 = vmatprep.subr.mxu0 0.0
  %597 = vmatpush1.msra.mxu0 %v193
  %598 = vmatprep.subr.mxu0 0.0
  %599 = vmatpush1.msra.mxu0 %v194
  %600 = vmatprep.subr.mxu0 0.0
  %601 = vmatpush1.msra.mxu0 %v195
  %602 = vmatprep.subr.mxu0 0.0
  %603 = vmatpush1.msra.mxu0 %v196
  %604 = vmatprep.subr.mxu0 0.0
  %605 = vmatpush1.msra.mxu0 %v197
  %606 = vmatprep.subr.mxu0 0.0
  %607 = vmatpush1.msra.mxu0 %v198
  %608 = vmatprep.subr.mxu0 0.0
  %609 = vmatpush1.msra.mxu0 %v199
  %610 = vmatprep.subr.mxu0 0.0
  %611 = vmatpush1.msra.mxu0 %v200
  %612 = vmatprep.subr.mxu0 0.0
  %613 = vmatpush1.msra.mxu0 %v201
  %614 = vmatprep.subr.mxu0 0.0
  %615 = vmatpush1.msra.mxu0 %v202
  %616 = vmatprep.subr.mxu0 0.0
  %617 = vmatpush1.msra.mxu0 %v203
  %618 = vmatprep.subr.mxu0 0.0
  %619 = vmatpush1.msra.mxu0 %v204
  %620 = vmatprep.subr.mxu0 0.0
  %621 = vmatpush1.msra.mxu0 %v205
  %622 = vmatprep.subr.mxu0 0.0
  %623 = vmatpush1.msra.mxu0 %v206
  %624 = vmatprep.subr.mxu0 0.0
  %625 = vmatpush1.msra.mxu0 %v207
  %626 = vmatprep.subr.mxu0 0.0
  %627 = vmatpush1.msra.mxu0 %v208
  %628 = vmatprep.subr.mxu0 0.0
  %629 = vmatpush1.msra.mxu0 %v209
  %630 = vmatprep.subr.mxu0 0.0
  %631 = vmatpush1.msra.mxu0 %v210
  %632 = vmatprep.subr.mxu0 0.0
  %633 = vmatpush1.msra.mxu0 %v211
  %634 = vmatprep.subr.mxu0 0.0
  %635 = vmatpush1.msra.mxu0 %v212
  %636 = vmatprep.subr.mxu0 0.0
  %637 = vmatpush1.msra.mxu0 %v213
  %638 = vmatprep.subr.mxu0 0.0
  %639 = vmatpush1.msra.mxu0 %v214
  %640 = vmatprep.subr.mxu0 0.0
  %641 = vmatpush1.msra.mxu0 %v215
  %642 = vmatprep.subr.mxu0 0.0
  %643 = vmatpush1.msra.mxu0 %v216
  %644 = vmatprep.subr.mxu0 0.0
  %645 = vmatpush1.msra.mxu0 %v217
  %646 = vmatprep.subr.mxu0 0.0
  %647 = vmatpush1.msra.mxu0 %v218
  %648 = vmatprep.mubr.f32.mxu0 %v25
  %649 = vmatmul.mubr.f32.gmra.mrb[0].mxu0 %v24
  %v650 = vpop.f32.mrb[0].mxu0
  %v651 = vadd.f32 %v581, %v650
  %v652 = vpop.f32.mrb[0].mxu0
  %653 = vdwg.mxu0
  %654 = vmatprep.subr.mxu0 0.0
  %655 = vmatpush1.msra.mxu0 %v219
  %656 = vmatprep.subr.mxu0 0.0
  %657 = vmatpush1.msra.mxu0 %v220
  %658 = vmatprep.subr.mxu0 0.0
  %659 = vmatpush1.msra.mxu0 %v221
  %660 = vmatprep.subr.mxu0 0.0
  %661 = vmatpush1.msra.mxu0 %v222
  %662 = vmatprep.subr.mxu0 0.0
  %663 = vmatpush1.msra.mxu0 0.0
  %664 = vmatprep.subr.mxu0 0.0
  %665 = vmatpush1.msra.mxu0 0.0
  %666 = vmatprep.subr.mxu0 0.0
  %667 = vmatpush1.msra.mxu0 0.0
  %668 = vmatprep.subr.mxu0 0.0
  %669 = vmatpush1.msra.mxu0 0.0
  %670 = vmatprep.subr.mxu0 0.0
  %671 = vmatpush1.msra.mxu0 0.0
  %672 = vmatprep.subr.mxu0 0.0
  %673 = vmatpush1.msra.mxu0 0.0
  %674 = vmatprep.subr.mxu0 0.0
  %675 = vmatpush1.msra.mxu0 0.0
  %676 = vmatprep.subr.mxu0 0.0
  %677 = vmatpush1.msra.mxu0 0.0
  %678 = vmatprep.subr.mxu0 0.0
  %679 = vmatpush1.msra.mxu0 0.0
  %680 = vmatprep.subr.mxu0 0.0
  %681 = vmatpush1.msra.mxu0 0.0
  %682 = vmatprep.subr.mxu0 0.0
  %683 = vmatpush1.msra.mxu0 0.0
  %684 = vmatprep.subr.mxu0 0.0
  %685 = vmatpush1.msra.mxu0 0.0
  %686 = vmatprep.subr.mxu0 0.0
  %687 = vmatpush1.msra.mxu0 0.0
  %688 = vmatprep.subr.mxu0 0.0
  %689 = vmatpush1.msra.mxu0 0.0
  %690 = vmatprep.subr.mxu0 0.0
  %691 = vmatpush1.msra.mxu0 0.0
  %692 = vmatprep.subr.mxu0 0.0
  %693 = vmatpush1.msra.mxu0 0.0
  %694 = vmatprep.subr.mxu0 0.0
  %695 = vmatpush1.msra.mxu0 0.0
  %696 = vmatprep.subr.mxu0 0.0
  %697 = vmatpush1.msra.mxu0 0.0
  %698 = vmatprep.subr.mxu0 0.0
  %699 = vmatpush1.msra.mxu0 0.0
  %700 = vmatprep.subr.mxu0 0.0
  %701 = vmatpush1.msra.mxu0 0.0
  %702 = vmatprep.subr.mxu0 0.0
  %703 = vmatpush1.msra.mxu0 0.0
  %704 = vmatprep.subr.mxu0 0.0
  %705 = vmatpush1.msra.mxu0 0.0
  %706 = vmatprep.subr.mxu0 0.0
  %707 = vmatpush1.msra.mxu0 0.0
  %708 = vmatprep.subr.mxu0 0.0
  %709 = vmatpush1.msra.mxu0 0.0
  %710 = vmatprep.subr.mxu0 0.0
  %711 = vmatpush1.msra.mxu0 0.0
  %712 = vmatprep.subr.mxu0 0.0
  %713 = vmatpush1.msra.mxu0 0.0
  %714 = vmatprep.subr.mxu0 0.0
  %715 = vmatpush1.msra.mxu0 0.0
  %716 = vmatprep.subr.mxu0 0.0
  %717 = vmatpush1.msra.mxu0 0.0
  %718 = vmatprep.mubr.f32.mxu0 0.0
  %719 = vmatmul.mubr.f32.gmra.mrb[0].mxu0 %v232
  %v720 = vpop.f32.mrb[0].mxu0
  %v721 = vadd.f32 %v651, %v720
  %v722 = vpop.f32.mrb[0].mxu0
  %723 = vdwg.mxu0
  %724 = vst [vmem:[%s3] sm:$0xff] %v721
  // Predicated region
  $region14: #{cnn_forward.5} parent=0 // pred_check
    _
  $region15: #{cnn_forward.5} parent=0 // pred_check_branch
    %726 = sbr.rel (0) target = $region17
  $region16: #{cnn_forward.5} parent=0 // pred_region
    _
  $region17: #{cnn_forward.5} parent=0 // pred_fallthru
    _
  // Predicated region
  $region18: #{cnn_forward.5} parent=0 // pred_check
    _
  $region19: #{cnn_forward.5} parent=0 // pred_check_branch
    %728 = sbr.rel (0) target = $region21
  $region20: #{cnn_forward.5} parent=0 // pred_region
    _
  $region21: #{cnn_forward.5} parent=0 // pred_fallthru
    _

</llo_original>
